<compile_context>
chip_gen: v7x
topology: tpu7x:2x2x1
jax: 0.10.0
libtpu: 0.0.40
codegen_flags: <defaults>
</compile_context>

<pallas_src>
import functools

import jax
import jax.numpy as jnp
from jax.experimental import pallas as pl
from jax.experimental.pallas import tpu as pltpu


def _round_up(x, m):
    return (x + m - 1) // m * m


# ----------------------------------------------------------------------------
# Fused kernel
# ----------------------------------------------------------------------------
def _fused_gcn_kernel(x_ref, a_ref, w_ref, b_ref, o_ref,
                      h_ref, xw_ref, acc_ref,
                      *, tm, tk):
    l = pl.program_id(0)          # layer
    i = pl.program_id(1)          # A_hat row tile
    k = pl.program_id(2)          # contraction (column) tile of A_hat
    nk = pl.num_programs(2)
    nl = pl.num_programs(0)

    k_off = pl.multiple_of(k * tk, tk)

    # --- first row tile of each layer: compute the k-th slab of XW -----------
    # XW = H_{l-1} @ W_l  (H_{-1} = X).  Spreading this over the k steps keeps
    # per-step MXU work balanced with the streamed A_hat tiles.
    @pl.when(i == 0)
    def _compute_xw_slab():
        @pl.when(l == 0)
        def _():
            xw_ref[pl.ds(k_off, tk), :] = jnp.dot(
                x_ref[pl.ds(k_off, tk), :], w_ref[0],
                preferred_element_type=jnp.float32).astype(xw_ref.dtype)

        @pl.when(l > 0)
        def _():
            xw_ref[pl.ds(k_off, tk), :] = jnp.dot(
                h_ref[pl.ds(k_off, tk), :], w_ref[0],
                preferred_element_type=jnp.float32).astype(xw_ref.dtype)

    # --- accumulate A_hat row-tile @ XW k-slab --------------------------------
    @pl.when(k == 0)
    def _init_acc():
        acc_ref[...] = jnp.zeros_like(acc_ref)

    acc_ref[...] += jnp.dot(
        a_ref[...], xw_ref[pl.ds(k_off, tk), :],
        preferred_element_type=jnp.float32)

    # --- epilogue at last k-slab: bias + ReLU / log_softmax -------------------
    @pl.when(k == nk - 1)
    def _finalize():
        out = acc_ref[...] + b_ref[0]          # f32, (tm, C_pad)

        @pl.when(l < nl - 1)
        def _hidden_layer():
            h = jnp.maximum(out, 0.0)          # ReLU (dropout = identity)
            row = pl.multiple_of(i * tm, tm)
            h_ref[pl.ds(row, tm), :] = h.astype(h_ref.dtype)
            o_ref[...] = h                     # keep output block defined

        @pl.when(l == nl - 1)
        def _last_layer():
            # Padded columns carry a -1e30 bias -> they vanish from the softmax.
            m = jnp.max(out, axis=1, keepdims=True)
            e = jnp.exp(out - m)
            lse = jnp.log(jnp.sum(e, axis=1, keepdims=True))
            o_ref[...] = out - m - lse


# ----------------------------------------------------------------------------
# Wrapper
# ----------------------------------------------------------------------------
def gcn_forward(x, a_hat, weights, biases):
    """Fused multi-layer GCN forward + log_softmax.

    x:       [N, C_in] float32
    a_hat:   [N, N]    float32 (normalized dense adjacency)
    weights: list of [C_in_l, C_out_l] float32
    biases:  list of [C_out_l]         float32
    returns  [N, C_out_last] float32 log-probabilities
    """
    n, in_ch = x.shape
    num_layers = len(weights)
    out_ch = weights[-1].shape[1]

    # Uniform padded feature width (lane-dense, multiple of 128).
    c_pad = _round_up(max([in_ch] + [w.shape[1] for w in weights]), 128)

    # Node-axis tiling: tm rows of A_hat per step, tk contraction columns.
    n_pad = _round_up(n, 128)
    tm = 256 if n_pad % 256 == 0 else 128
    tk = 512 if n_pad % 512 == 0 else (256 if n_pad % 256 == 0 else 128)

    # Pad + cast operands.  MXU operands in bf16, bias stays f32.
    x_p = jnp.zeros((n_pad, c_pad), jnp.bfloat16)
    x_p = x_p.at[:n, :in_ch].set(x.astype(jnp.bfloat16))
    a_p = jnp.zeros((n_pad, n_pad), jnp.bfloat16)
    a_p = a_p.at[:n, :n].set(a_hat.astype(jnp.bfloat16))
    w_stack = jnp.zeros((num_layers, c_pad, c_pad), jnp.bfloat16)
    b_stack = jnp.zeros((num_layers, 1, c_pad), jnp.float32)
    for l, (w, b) in enumerate(zip(weights, biases)):
        ci, co = w.shape
        w_stack = w_stack.at[l, :ci, :co].set(w.astype(jnp.bfloat16))
        b_stack = b_stack.at[l, 0, :co].set(b.reshape(-1).astype(jnp.float32))
    # Mask padded feature columns out of the final log_softmax by baking a very
    # negative bias into the padded columns of the LAST layer only.
    if out_ch < c_pad:
        b_stack = b_stack.at[num_layers - 1, 0, out_ch:].set(-1e30)

    grid = (num_layers, n_pad // tm, n_pad // tk)
    kernel = functools.partial(_fused_gcn_kernel, tm=tm, tk=tk)

    # VMEM budget (advisory limit, leave headroom; cap at v7x physical 64 MiB).
    vmem_need = (
        2 * n_pad * c_pad * 2        # H + XW scratch (bf16)
        + tm * c_pad * 4             # accumulator (f32)
        + 2 * n_pad * c_pad * 2      # resident X (double-buffered, bf16)
        + 2 * tm * tk * 2            # A_hat tiles (double-buffered, bf16)
        + 2 * c_pad * c_pad * 2      # W (double-buffered, bf16)
        + 2 * c_pad * 4              # bias
        + 2 * tm * c_pad * 4         # output blocks
    )
    vmem_limit = int(min(64 * 2**20, max(32 * 2**20, int(1.5 * vmem_need) + (4 << 20))))

    out_pad = pl.pallas_call(
        kernel,
        out_shape=jax.ShapeDtypeStruct((n_pad, c_pad), jnp.float32),
        grid_spec=pltpu.PrefetchScalarGridSpec(
            num_scalar_prefetch=0,
            grid=grid,
            in_specs=[
                # X: resident whole array (only read at layer 0), DMA'd once.
                pl.BlockSpec((n_pad, c_pad), lambda l, i, k: (0, 0)),
                # A_hat: streamed (tm, tk) tiles.
                pl.BlockSpec((tm, tk), lambda l, i, k: (i, k)),
                # Stacked per-layer weights / biases (re-DMA only at layer change).
                pl.BlockSpec((1, c_pad, c_pad), lambda l, i, k: (l, 0, 0)),
                pl.BlockSpec((1, 1, c_pad), lambda l, i, k: (l, 0, 0)),
            ],
            out_specs=pl.BlockSpec((tm, c_pad), lambda l, i, k: (i, 0)),
            scratch_shapes=[
                pltpu.VMEM((n_pad, c_pad), jnp.bfloat16),   # H (activations)
                pltpu.VMEM((n_pad, c_pad), jnp.bfloat16),   # XW of current layer
                pltpu.VMEM((tm, c_pad), jnp.float32),       # A@XW accumulator
            ]),
        compiler_params=pltpu.CompilerParams(
            dimension_semantics=("arbitrary", "arbitrary", "arbitrary"),
            vmem_limit_bytes=vmem_limit),
    )(x_p, a_p, w_stack, b_stack)

    return out_pad[:n, :out_ch]


# ----------------------------------------------------------------------------
# Pure-JAX reference (mirrors the kernel's bf16 MXU / f32 accumulate precision)
# ----------------------------------------------------------------------------
def gcn_reference(x, a_hat, weights, biases):
    a = a_hat.astype(jnp.bfloat16)
    h = x.astype(jnp.bfloat16)
    out = None
    for idx, (w, b) in enumerate(zip(weights, biases)):
        xw = jnp.dot(h, w.astype(jnp.bfloat16),
                     preferred_element_type=jnp.float32).astype(jnp.bfloat16)
        out = jnp.dot(a, xw, preferred_element_type=jnp.float32) + b[None, :]
        if idx < len(weights) - 1:
            h = jnp.maximum(out, 0.0).astype(jnp.bfloat16)
    return jax.nn.log_softmax(out, axis=1)


# ----------------------------------------------------------------------------
# Parameter / input construction (deterministic, synthetic)
# ----------------------------------------------------------------------------
def init_params(key, in_channels, hidden_channels, out_channels, num_layers):
    dims = [in_channels] + [hidden_channels] * (num_layers - 1) + [out_channels]
    weights, biases = [], []
    for i in range(num_layers):
        key, kw, kb = jax.random.split(key, 3)
        fan_in, fan_out = dims[i], dims[i + 1]
        limit = jnp.sqrt(6.0 / (fan_in + fan_out))
        w = jax.random.uniform(kw, (fan_in, fan_out), jnp.float32, -limit, limit)
        b = 0.1 * jax.random.normal(kb, (fan_out,), jnp.float32)
        weights.append(w)
        biases.append(b)
    return weights, biases


def make_normalized_adj(key, n):
    """Random symmetric graph -> dense GCN-normalized adjacency."""
    logits = jax.random.uniform(key, (n, n))
    adj = (logits > 0.7).astype(jnp.float32)
    adj = jnp.maximum(adj, adj.T)                      # symmetric
    adj = adj * (1.0 - jnp.eye(n)) + jnp.eye(n)        # add self loops
    deg = jnp.sum(adj, axis=1)
    d_inv_sqrt = 1.0 / jnp.sqrt(jnp.maximum(deg, 1.0))
    return adj * d_inv_sqrt[:, None] * d_inv_sqrt[None, :]


if __name__ == "__main__":
    # Small synthetic problem (N intentionally not a multiple of 8/128).
    N = 40
    IN_CH = 16
    HIDDEN_CH = 32
    OUT_CH = 8
    NUM_LAYERS = 3
    DROPOUT = 0.5          # inference-mode identity

    key = jax.random.PRNGKey(0)
    kx, ka, kp = jax.random.split(key, 3)

    x = jax.random.normal(kx, (N, IN_CH), jnp.float32)
    a_hat = make_normalized_adj(ka, N)
    weights, biases = init_params(kp, IN_CH, HIDDEN_CH, OUT_CH, NUM_LAYERS)

    out = gcn_forward(x, a_hat, weights, biases)
    out = jax.block_until_ready(out)

    assert out.shape == (N, OUT_CH)
    assert bool(jnp.all(jnp.isfinite(out)))
    # rows of log_softmax should exponentiate-sum to ~1
    assert jnp.allclose(jnp.sum(jnp.exp(out), axis=1), 1.0, atol=1e-3)
    # match precision-equivalent JAX reference
    ref = gcn_reference(x, a_hat, weights, biases)
    assert float(jnp.max(jnp.abs(out - ref))) < 5e-2

    print("KERNEL_OK")
</pallas_src>

<mosaic_0001>
module attributes {stable_mosaic.version = 11 : i64} {
  func.func @_fused_gcn_kernel(%arg0: i32, %arg1: i32, %arg2: i32, %arg3: memref<128x128xbf16, #tpu.memory_space<vmem>>, %arg4: memref<128x128xbf16, #tpu.memory_space<vmem>>, %arg5: memref<1x128x128xbf16, #tpu.memory_space<vmem>>, %arg6: memref<1x1x128xf32, #tpu.memory_space<vmem>>, %arg7: memref<128x128xf32, #tpu.memory_space<vmem>>, %arg8: memref<128x128xbf16, #tpu.memory_space<vmem>>, %arg9: memref<128x128xbf16, #tpu.memory_space<vmem>>, %arg10: memref<128x128xf32, #tpu.memory_space<vmem>>) attributes {dimension_semantics = [#tpu.dimension_semantics<arbitrary>, #tpu.dimension_semantics<arbitrary>, #tpu.dimension_semantics<arbitrary>], iteration_bounds = array<i64: 3, 1, 1>, scalar_prefetch = 0 : i64, scratch_operands = 3 : i64, tpu.core_type = #tpu.core_type<tc>, window_params = [{pipeline_mode = #tpu.pipeline_mode<synchronous>, transform_indices = @transform_0, window_bounds = array<i64: 128, 128>}, {transform_indices = @transform_1, window_bounds = array<i64: 128, 128>}, {transform_indices = @transform_2, window_bounds = array<i64: 1, 128, 128>}, {transform_indices = @transform_3, window_bounds = array<i64: 1, 1, 128>}, {transform_indices = @transform_4, window_bounds = array<i64: 128, 128>}]} {
    %c128_i32 = arith.constant 128 : i32
    %0 = arith.muli %arg2, %c128_i32 : i32
    %1 = tpu.assume_multiple %0, 128 : i32
    %c0_i32 = arith.constant 0 : i32
    %2 = arith.cmpi eq, %arg1, %c0_i32 : i32
    %3 = arith.extui %2 : i1 to i32
    %c0_i32_0 = arith.constant 0 : i32
    %4 = arith.cmpi ne, %3, %c0_i32_0 : i32
    scf.if %4 {
      %c0_i32_11 = arith.constant 0 : i32
      %18 = arith.cmpi eq, %arg0, %c0_i32_11 : i32
      %19 = arith.extui %18 : i1 to i32
      %c0_i32_12 = arith.constant 0 : i32
      %20 = arith.cmpi ne, %19, %c0_i32_12 : i32
      scf.if %20 {
        %24 = arith.index_cast %1 : i32 to index
        %c0_15 = arith.constant 0 : index
        %25 = vector.load %arg3[%24, %c0_15] : memref<128x128xbf16, #tpu.memory_space<vmem>>, vector<128x128xbf16>
        %c0_16 = arith.constant 0 : index
        %c0_17 = arith.constant 0 : index
        %c0_18 = arith.constant 0 : index
        %26 = vector.load %arg5[%c0_16, %c0_17, %c0_18] : memref<1x128x128xbf16, #tpu.memory_space<vmem>>, vector<1x128x128xbf16>
        %27 = vector.shape_cast %26 : vector<1x128x128xbf16> to vector<128x128xbf16>
        %cst_19 = arith.constant dense<0.000000e+00> : vector<128x128xf32>
        %28 = tpu.matmul %25, %27, %cst_19 {dimension_numbers = #tpu.dot_dimension_numbers<[1], [0], [0], [1], [0, 0, 1, 1], [], []>} : vector<128x128xbf16>, vector<128x128xbf16>, vector<128x128xf32> -> vector<128x128xf32>
        %29 = arith.truncf %28 : vector<128x128xf32> to vector<128x128xbf16>
        %30 = arith.index_cast %1 : i32 to index
        %c0_20 = arith.constant 0 : index
        %31 = vector.load %arg9[%30, %c0_20] : memref<128x128xbf16, #tpu.memory_space<vmem>>, vector<128x128xbf16>
        tpu.vector_store %arg9[%30, %c0_20], %29 {strides = array<i32>} : memref<128x128xbf16, #tpu.memory_space<vmem>>, vector<128x128xbf16>,
      } else {
      }
      %c0_i32_13 = arith.constant 0 : i32
      %21 = arith.cmpi sgt, %arg0, %c0_i32_13 : i32
      %22 = arith.extui %21 : i1 to i32
      %c0_i32_14 = arith.constant 0 : i32
      %23 = arith.cmpi ne, %22, %c0_i32_14 : i32
      scf.if %23 {
        %24 = arith.index_cast %1 : i32 to index
        %c0_15 = arith.constant 0 : index
        %25 = vector.load %arg8[%24, %c0_15] : memref<128x128xbf16, #tpu.memory_space<vmem>>, vector<128x128xbf16>
        %c0_16 = arith.constant 0 : index
        %c0_17 = arith.constant 0 : index
        %c0_18 = arith.constant 0 : index
        %26 = vector.load %arg5[%c0_16, %c0_17, %c0_18] : memref<1x128x128xbf16, #tpu.memory_space<vmem>>, vector<1x128x128xbf16>
        %27 = vector.shape_cast %26 : vector<1x128x128xbf16> to vector<128x128xbf16>
        %cst_19 = arith.constant dense<0.000000e+00> : vector<128x128xf32>
        %28 = tpu.matmul %25, %27, %cst_19 {dimension_numbers = #tpu.dot_dimension_numbers<[1], [0], [0], [1], [0, 0, 1, 1], [], []>} : vector<128x128xbf16>, vector<128x128xbf16>, vector<128x128xf32> -> vector<128x128xf32>
        %29 = arith.truncf %28 : vector<128x128xf32> to vector<128x128xbf16>
        %30 = arith.index_cast %1 : i32 to index
        %c0_20 = arith.constant 0 : index
        %31 = vector.load %arg9[%30, %c0_20] : memref<128x128xbf16, #tpu.memory_space<vmem>>, vector<128x128xbf16>
        tpu.vector_store %arg9[%30, %c0_20], %29 {strides = array<i32>} : memref<128x128xbf16, #tpu.memory_space<vmem>>, vector<128x128xbf16>,
      } else {
      }
    } else {
    }
    %c0_i32_1 = arith.constant 0 : i32
    %5 = arith.cmpi eq, %arg2, %c0_i32_1 : i32
    %6 = arith.extui %5 : i1 to i32
    %c0_i32_2 = arith.constant 0 : i32
    %7 = arith.cmpi ne, %6, %c0_i32_2 : i32
    scf.if %7 {
      %cst_11 = arith.constant 0.000000e+00 : f32
      %18 = vector.broadcast %cst_11 : f32 to vector<128x128xf32>
      %c0_12 = arith.constant 0 : index
      %c0_13 = arith.constant 0 : index
      %19 = vector.load %arg10[%c0_12, %c0_13] : memref<128x128xf32, #tpu.memory_space<vmem>>, vector<128x128xf32>
      tpu.vector_store %arg10[%c0_12, %c0_13], %18 {strides = array<i32>} : memref<128x128xf32, #tpu.memory_space<vmem>>, vector<128x128xf32>,
    } else {
    }
    %c0 = arith.constant 0 : index
    %c0_3 = arith.constant 0 : index
    %8 = vector.load %arg10[%c0, %c0_3] : memref<128x128xf32, #tpu.memory_space<vmem>>, vector<128x128xf32>
    %c0_4 = arith.constant 0 : index
    %c0_5 = arith.constant 0 : index
    %9 = vector.load %arg4[%c0_4, %c0_5] : memref<128x128xbf16, #tpu.memory_space<vmem>>, vector<128x128xbf16>
    %10 = arith.index_cast %1 : i32 to index
    %c0_6 = arith.constant 0 : index
    %11 = vector.load %arg9[%10, %c0_6] : memref<128x128xbf16, #tpu.memory_space<vmem>>, vector<128x128xbf16>
    %cst = arith.constant dense<0.000000e+00> : vector<128x128xf32>
    %12 = tpu.matmul %9, %11, %cst {dimension_numbers = #tpu.dot_dimension_numbers<[1], [0], [0], [1], [0, 0, 1, 1], [], []>} : vector<128x128xbf16>, vector<128x128xbf16>, vector<128x128xf32> -> vector<128x128xf32>
    %13 = arith.addf %8, %12 : vector<128x128xf32>
    %c0_7 = arith.constant 0 : index
    %c0_8 = arith.constant 0 : index
    %14 = vector.load %arg10[%c0_7, %c0_8] : memref<128x128xf32, #tpu.memory_space<vmem>>, vector<128x128xf32>
    tpu.vector_store %arg10[%c0_7, %c0_8], %13 {strides = array<i32>} : memref<128x128xf32, #tpu.memory_space<vmem>>, vector<128x128xf32>,
    %c0_i32_9 = arith.constant 0 : i32
    %15 = arith.cmpi eq, %arg2, %c0_i32_9 : i32
    %16 = arith.extui %15 : i1 to i32
    %c0_i32_10 = arith.constant 0 : i32
    %17 = arith.cmpi ne, %16, %c0_i32_10 : i32
    scf.if %17 {
      %c0_11 = arith.constant 0 : index
      %c0_12 = arith.constant 0 : index
      %18 = vector.load %arg10[%c0_11, %c0_12] : memref<128x128xf32, #tpu.memory_space<vmem>>, vector<128x128xf32>
      %c0_13 = arith.constant 0 : index
      %c0_14 = arith.constant 0 : index
      %c0_15 = arith.constant 0 : index
      %19 = vector.load %arg6[%c0_13, %c0_14, %c0_15] : memref<1x1x128xf32, #tpu.memory_space<vmem>>, vector<1x1x128xf32>
      %20 = vector.shape_cast %19 : vector<1x1x128xf32> to vector<1x128xf32>
      %21 = vector.broadcast %20 : vector<1x128xf32> to vector<128x128xf32>
      %22 = arith.addf %18, %21 : vector<128x128xf32>
      %c2_i32 = arith.constant 2 : i32
      %23 = arith.cmpi slt, %arg0, %c2_i32 : i32
      %24 = arith.extui %23 : i1 to i32
      %c0_i32_16 = arith.constant 0 : i32
      %25 = arith.cmpi ne, %24, %c0_i32_16 : i32
      scf.if %25 {
        %cst_19 = arith.constant 0.000000e+00 : f32
        %29 = vector.broadcast %cst_19 : f32 to vector<128x128xf32>
        %30 = arith.maximumf %22, %29 : vector<128x128xf32>
        %c128_i32_20 = arith.constant 128 : i32
        %31 = arith.muli %arg1, %c128_i32_20 : i32
        %32 = tpu.assume_multiple %31, 128 : i32
        %33 = arith.truncf %30 : vector<128x128xf32> to vector<128x128xbf16>
        %34 = arith.index_cast %32 : i32 to index
        %c0_21 = arith.constant 0 : index
        %35 = vector.load %arg8[%34, %c0_21] : memref<128x128xbf16, #tpu.memory_space<vmem>>, vector<128x128xbf16>
        tpu.vector_store %arg8[%34, %c0_21], %33 {strides = array<i32>} : memref<128x128xbf16, #tpu.memory_space<vmem>>, vector<128x128xbf16>,
        %c0_22 = arith.constant 0 : index
        %c0_23 = arith.constant 0 : index
        %36 = vector.load %arg7[%c0_22, %c0_23] : memref<128x128xf32, #tpu.memory_space<vmem>>, vector<128x128xf32>
        tpu.vector_store %arg7[%c0_22, %c0_23], %30 {strides = array<i32>} : memref<128x128xf32, #tpu.memory_space<vmem>>, vector<128x128xf32>,
      } else {
      }
      %c2_i32_17 = arith.constant 2 : i32
      %26 = arith.cmpi eq, %arg0, %c2_i32_17 : i32
      %27 = arith.extui %26 : i1 to i32
      %c0_i32_18 = arith.constant 0 : i32
      %28 = arith.cmpi ne, %27, %c0_i32_18 : i32
      scf.if %28 {
        %cst_19 = arith.constant dense<0xFF800000> : vector<128xf32>
        %29 = vector.multi_reduction <maximumf>, %22, %cst_19 [1] : vector<128x128xf32> to vector<128xf32>
        %30 = vector.shape_cast %29 : vector<128xf32> to vector<128x1xf32>
        %31 = vector.broadcast %30 : vector<128x1xf32> to vector<128x128xf32>
        %32 = arith.subf %22, %31 : vector<128x128xf32>
        %33 = math.exp %32 : vector<128x128xf32>
        %cst_20 = arith.constant dense<0.000000e+00> : vector<128xf32>
        %34 = vector.multi_reduction <add>, %33, %cst_20 [1] : vector<128x128xf32> to vector<128xf32>
        %35 = vector.shape_cast %34 : vector<128xf32> to vector<128x1xf32>
        %36 = math.log %35 : vector<128x1xf32>
        %37 = vector.broadcast %30 : vector<128x1xf32> to vector<128x128xf32>
        %38 = arith.subf %22, %37 : vector<128x128xf32>
        %39 = vector.broadcast %36 : vector<128x1xf32> to vector<128x128xf32>
        %40 = arith.subf %38, %39 : vector<128x128xf32>
        %c0_21 = arith.constant 0 : index
        %c0_22 = arith.constant 0 : index
        %41 = vector.load %arg7[%c0_21, %c0_22] : memref<128x128xf32, #tpu.memory_space<vmem>>, vector<128x128xf32>
        tpu.vector_store %arg7[%c0_21, %c0_22], %40 {strides = array<i32>} : memref<128x128xf32, #tpu.memory_space<vmem>>, vector<128x128xf32>,
      } else {
      }
    } else {
    }
    return
  }
  func.func @transform_0(%arg0: i32, %arg1: i32, %arg2: i32) -> (i32, i32) {
    %c0_i32 = arith.constant 0 : i32
    %c0_i32_0 = arith.constant 0 : i32
    %c0_i32_1 = arith.constant 0 : i32
    return %c0_i32, %c0_i32_0 : i32, i32
  }
  func.func @transform_1(%arg0: i32, %arg1: i32, %arg2: i32) -> (i32, i32) {
    %c0_i32 = arith.constant 0 : i32
    return %arg1, %arg2 : i32, i32
  }
  func.func @transform_2(%arg0: i32, %arg1: i32, %arg2: i32) -> (i32, i32, i32) {
    %c0_i32 = arith.constant 0 : i32
    %c0_i32_0 = arith.constant 0 : i32
    %c0_i32_1 = arith.constant 0 : i32
    return %arg0, %c0_i32, %c0_i32_0 : i32, i32, i32
  }
  func.func @transform_3(%arg0: i32, %arg1: i32, %arg2: i32) -> (i32, i32, i32) {
    %c0_i32 = arith.constant 0 : i32
    %c0_i32_0 = arith.constant 0 : i32
    %c0_i32_1 = arith.constant 0 : i32
    return %arg0, %c0_i32, %c0_i32_0 : i32, i32, i32
  }
  func.func @transform_4(%arg0: i32, %arg1: i32, %arg2: i32) -> (i32, i32) {
    %c0_i32 = arith.constant 0 : i32
    %c0_i32_0 = arith.constant 0 : i32
    return %arg1, %c0_i32 : i32, i32
  }
}

</mosaic_0001>

<llo_original>
// kernel: tpu_custom_call.1
$region0: #{tpu_custom_call.1}
  #allocation0 [shape = 'u32[]', space=smem, size = 0x4, offset = 0x4, fixed_abs, tag = 'smem constant byte address 0x4 - core index']
  #allocation1 [shape = 'u32[144,128]{1,0:T(1,128)}', space=vmem, size = 0x12000, scoped, tag = 'internal scratch']
  #allocation2 [shape = 'bf16[128,128]{1,0:T(16,128)(2,1)}', space=vmem, size = 0x8000, scoped, tag = 'scratch operand']
  #allocation3 [shape = 'bf16[128,128]{1,0:T(16,128)(2,1)}', space=vmem, size = 0x8000, scoped, tag = 'scratch operand']
  #allocation4 [shape = 'f32[128,128]{1,0:T(8,128)}', space=vmem, size = 0x10000, scoped, tag = 'scratch operand']
  %s0 = inlined_call_operand.hbm [shape: bf16[128,128], index: 0, kind: input, shape index: {}]
  %s1 = inlined_call_operand.hbm [shape: bf16[128,128], index: 1, kind: input, shape index: {}]
  %s2 = inlined_call_operand.hbm [shape: bf16[3,128,128], index: 2, kind: input, shape index: {}]
  %s3 = inlined_call_operand.vmem [shape: f32[3,1,128], index: 3, kind: input, shape index: {}]
  %s4 = inlined_call_operand.hbm [shape: f32[128,128], index: 4, kind: output, shape index: {}]
  %s5 = sld [smem:[#allocation0]]
  $region89: #{tpu_custom_call.1} parent=0
    _
  %s7 = ssub.s32 1, %s5
  %s8 = scalar_select 0, %s7, %s5
  $region1: #{tpu_custom_call.1} parent=0
    #allocation5 [shape = 'u8[32768]{0}', space=vmem, size = 0x8000, scoped, tag = 'input window, operand 0, single buffered']
    #allocation6 [shape = 's32[2]{0}', space=sflag, size = 0x8, scoped, tag = 'scoped memory for tpu_custom_call.1']
    #allocation7 [shape = 's32[2]{0}', space=sflag, size = 0x8, scoped, tag = 'scoped memory for tpu_custom_call.1']
    #allocation8 [shape = 'u8[32768]{0}', space=vmem, size = 0x8000, scoped, tag = 'input window, operand 1, single buffered']
    #allocation9 [shape = 's32[1]{0}', space=sflag, size = 0x4, scoped, tag = 'scoped memory for tpu_custom_call.1']
    #allocation10 [shape = 'u8[65536]{0}', space=vmem, size = 0x10000, scoped, tag = 'input window, operand 2']
    #allocation11 [shape = 'u8[65536]{0}', space=vmem, size = 0x10000, scoped, tag = 'output window, operand 0, single buffered']
    %9 = vsyncpa [#allocation6], 0
    %10 = vsyncpa [#allocation9], 0
    %11 = vsyncpa [#allocation7], 0
    loop: start=0, step=1, limit=5
    $region2: #{tpu_custom_call.1} parent=1 // loop_pre_header
      _
    $region3: #{tpu_custom_call.1} parent=1 // loop_header
      %s13 = sphi 0, %s17
      %p14 = scmp.ge.s32.totalorder %s13, 5
      %s20 = sphi 0, %s39
      %s21 = sphi 0, %s35
      %s22 = sphi 0, %s31
      %s23 = sphi 0, %s20
      %s24 = sphi 0, %s21
      %s25 = sphi 0, %s22
      %s26 = sphi 0, %s23
      %s27 = sphi 0, %s24
      %s28 = sphi 0, %s25
      %s40 = sphi 0, %s40
      %s42 = sphi 0, %s40
      %s43 = sphi 0, %s42
      %s57 = sphi 0, %s43
      %s65 = sphi 0, %s67
      %s68 = sphi 0, %s65
      %s69 = sphi 0, %s68
      %s85 = sphi 0, %s69
      %s91 = sphi 0, %s93
      %s94 = sphi 0, %s91
      %s95 = sphi 0, %s94
      %s111 = sphi 0, %s95
      %s117 = sphi 0, %s119
      %s120 = sphi 0, %s117
      %s121 = sphi 0, %s120
      %s137 = sphi 0, %s121
      %s143 = sphi 0, %s145
      %s146 = sphi 0, %s143
      %s147 = sphi 0, %s146
      %s163 = sphi 0, %s147
    $region4: #{tpu_custom_call.1} parent=1 // loop_header_branch
      %16 = sbr.rel (%p14) target = $region8
    $region5: #{tpu_custom_call.1} parent=1 // loop_body
      %s18 = ssub.s32 %s13, 1
      %s19 = ssub.s32 %s13, 2
      %s29 = sadd.s32 1, %s22
      %p30 = scmp.ge.s32.totalorder %s29, 1
      %s31 = scalar_select %p30, 0, %s29
      %s32 = sadd.s32 1, %s21
      %s33 = scalar_select %p30, %s32, %s21
      %p34 = scmp.ge.s32.totalorder %s33, 1
      %s35 = scalar_select %p34, 0, %s33
      %s36 = sadd.s32 1, %s20
      %s37 = scalar_select %p34, %s36, %s20
      %p38 = scmp.ge.s32.totalorder %s37, 3
      %s39 = scalar_select %p38, 0, %s37
      %s41 = sadd.s32 %s40, 1
      %p44 = scmp.eq.s32.totalorder %s13, 2
      %p45 = scmp.ne.s32.totalorder %s40, %s42
      %p46 = scmp.eq.s32.totalorder %s13, 0
      %p47 = por %p45, %p46
      %p48 = scmp.ne.s32.totalorder %s40, %s42
      %p49 = scmp.eq.s32.totalorder %s18, 2
      %p50 = por %p48, %p49
      %p51 = scmp.ne.s32.totalorder %s42, %s43
      %p52 = scmp.eq.s32.totalorder %s18, 0
      %p53 = por %p51, %p52
      %p54 = scmp.ne.s32.totalorder %s42, %s43
      %p55 = scmp.eq.s32.totalorder %s19, 2
      %p56 = por %p54, %p55
      %p58 = scmp.ne.s32.totalorder %s43, %s57
      %p59 = scmp.eq.s32.totalorder %s19, 0
      %p60 = por %p58, %p59
      %s61 = ssub.s32 %s21, %s35
      %s62 = ssub.s32 %s22, %s31
      %s63 = sor.u32 %s61, %s62
      %p64 = scmp.eq.s32.totalorder %s63, 0
      %s66 = sadd.s32 %s65, 1
      %s67 = scalar_select %p64, %s65, %s66
      %p70 = pneg %p64
      %p71 = scmp.eq.s32.totalorder %s13, 2
      %p72 = por %p70, %p71
      %p73 = scmp.ne.s32.totalorder %s65, %s68
      %p74 = scmp.eq.s32.totalorder %s13, 0
      %p75 = por %p73, %p74
      %p76 = scmp.ne.s32.totalorder %s65, %s68
      %p77 = scmp.eq.s32.totalorder %s18, 2
      %p78 = por %p76, %p77
      %p79 = scmp.ne.s32.totalorder %s68, %s69
      %p80 = scmp.eq.s32.totalorder %s18, 0
      %p81 = por %p79, %p80
      %p82 = scmp.ne.s32.totalorder %s68, %s69
      %p83 = scmp.eq.s32.totalorder %s19, 2
      %p84 = por %p82, %p83
      %p86 = scmp.ne.s32.totalorder %s69, %s85
      %p87 = scmp.eq.s32.totalorder %s19, 0
      %p88 = por %p86, %p87
      %s89 = ssub.s32 %s20, %s39
      %p90 = scmp.eq.s32.totalorder %s89, 0
      %s92 = sadd.s32 %s91, 1
      %s93 = scalar_select %p90, %s91, %s92
      %p96 = pneg %p90
      %p97 = scmp.eq.s32.totalorder %s13, 2
      %p98 = por %p96, %p97
      %p99 = scmp.ne.s32.totalorder %s91, %s94
      %p100 = scmp.eq.s32.totalorder %s13, 0
      %p101 = por %p99, %p100
      %p102 = scmp.ne.s32.totalorder %s91, %s94
      %p103 = scmp.eq.s32.totalorder %s18, 2
      %p104 = por %p102, %p103
      %p105 = scmp.ne.s32.totalorder %s94, %s95
      %p106 = scmp.eq.s32.totalorder %s18, 0
      %p107 = por %p105, %p106
      %p108 = scmp.ne.s32.totalorder %s94, %s95
      %p109 = scmp.eq.s32.totalorder %s19, 2
      %p110 = por %p108, %p109
      %p112 = scmp.ne.s32.totalorder %s95, %s111
      %p113 = scmp.eq.s32.totalorder %s19, 0
      %p114 = por %p112, %p113
      %s115 = ssub.s32 %s20, %s39
      %p116 = scmp.eq.s32.totalorder %s115, 0
      %s118 = sadd.s32 %s117, 1
      %s119 = scalar_select %p116, %s117, %s118
      %p122 = pneg %p116
      %p123 = scmp.eq.s32.totalorder %s13, 2
      %p124 = por %p122, %p123
      %p125 = scmp.ne.s32.totalorder %s117, %s120
      %p126 = scmp.eq.s32.totalorder %s13, 0
      %p127 = por %p125, %p126
      %p128 = scmp.ne.s32.totalorder %s117, %s120
      %p129 = scmp.eq.s32.totalorder %s18, 2
      %p130 = por %p128, %p129
      %p131 = scmp.ne.s32.totalorder %s120, %s121
      %p132 = scmp.eq.s32.totalorder %s18, 0
      %p133 = por %p131, %p132
      %p134 = scmp.ne.s32.totalorder %s120, %s121
      %p135 = scmp.eq.s32.totalorder %s19, 2
      %p136 = por %p134, %p135
      %p138 = scmp.ne.s32.totalorder %s121, %s137
      %p139 = scmp.eq.s32.totalorder %s19, 0
      %p140 = por %p138, %p139
      %s141 = ssub.s32 %s21, %s35
      %p142 = scmp.eq.s32.totalorder %s141, 0
      %s144 = sadd.s32 %s143, 1
      %s145 = scalar_select %p142, %s143, %s144
      %p148 = pneg %p142
      %p149 = scmp.eq.s32.totalorder %s13, 2
      %p150 = por %p148, %p149
      %p151 = scmp.ne.s32.totalorder %s143, %s146
      %p152 = scmp.eq.s32.totalorder %s13, 0
      %p153 = por %p151, %p152
      %p154 = scmp.ne.s32.totalorder %s143, %s146
      %p155 = scmp.eq.s32.totalorder %s18, 2
      %p156 = por %p154, %p155
      %p157 = scmp.ne.s32.totalorder %s146, %s147
      %p158 = scmp.eq.s32.totalorder %s18, 0
      %p159 = por %p157, %p158
      %p160 = scmp.ne.s32.totalorder %s146, %s147
      %p161 = scmp.eq.s32.totalorder %s19, 2
      %p162 = por %p160, %p161
      %p164 = scmp.ne.s32.totalorder %s147, %s163
      %p165 = scmp.eq.s32.totalorder %s19, 0
      %p166 = por %p164, %p165
      %p167 = scmp.le.s32.totalorder 1, %s13
      %p168 = scmp.lt.s32.totalorder %s13, 4
      %p169 = pnand %p167, %p168
      %p170 = pneg %p169
      // Predicated region
      $region9: #{tpu_custom_call.1} parent=5 // pred_check
        _
      $region10: #{tpu_custom_call.1} parent=5 // pred_check_branch
        %172 = sbr.rel (%p169) target = $region12
      $region11: #{tpu_custom_call.1} parent=5 // pred_region
        %s173 = ssub.s32 %s13, 1
        // Predicated region
        $region13: #{tpu_custom_call.1} parent=11 // pred_check
          %p174 = pneg %p53
        $region14: #{tpu_custom_call.1} parent=11 // pred_check_branch
          %176 = sbr.rel (%p174) target = $region16
        $region15: #{tpu_custom_call.1} parent=11 // pred_region
          %s178 = ssub.s32 1024, 1024
          %179 = vsyncadd [#allocation6], %s178
          %s180 = sshll.u32 [#allocation5], 4
          %s181 = int_to_ptr.vmem [resolvable:$true] %s180
          %186 = dma.hbm_to_vmem [thread:$0]  %s0, 1024, %s181, [#allocation6], 64, 64, 4
        $region16: #{tpu_custom_call.1} parent=11 // pred_fallthru
          _
        // Predicated region
        $region17: #{tpu_custom_call.1} parent=11 // pred_check
          %p187 = pneg %p81
        $region18: #{tpu_custom_call.1} parent=11 // pred_check_branch
          %189 = sbr.rel (%p187) target = $region20
        $region19: #{tpu_custom_call.1} parent=11 // pred_region
          %s190 = smul.u32 16, %s24
          %s192 = ssub.s32 1024, 1024
          %193 = vsyncadd [#allocation9], %s192
          %s194 = sadd.s32 %s25, %s190
          %s195 = smul.addr %s194, 64
          %s196 = scalar_lea.hbm %s1, %s195
          %s197 = sshll.u32 [#allocation8], 4
          %s198 = int_to_ptr.vmem [resolvable:$true] %s197
          %203 = dma.hbm_to_vmem [thread:$0]  %s196, 1024, %s198, [#allocation9], 64, 64, 4
        $region20: #{tpu_custom_call.1} parent=11 // pred_fallthru
          _
      $region12: #{tpu_custom_call.1} parent=5 // pred_fallthru
        _
      %p204 = scmp.lt.s32.totalorder %s13, 3
      // Predicated region
      $region21: #{tpu_custom_call.1} parent=5 // pred_check
        %p205 = pneg %p204
      $region22: #{tpu_custom_call.1} parent=5 // pred_check_branch
        %207 = sbr.rel (%p205) target = $region24
      $region23: #{tpu_custom_call.1} parent=5 // pred_region
        // Predicated region
        $region25: #{tpu_custom_call.1} parent=23 // pred_check
          %p208 = pneg %p101
        $region26: #{tpu_custom_call.1} parent=23 // pred_check_branch
          %210 = sbr.rel (%p208) target = $region28
        $region27: #{tpu_custom_call.1} parent=23 // pred_region
          %s211 = sand.u32 %s13, 1
          %s212 = scalar_lea.sflag [#allocation6], %s211
          %s213 = sand.u32 %s91, 1
          %s214 = smul.addr %s213, 64
          %s215 = scalar_lea.vmem [#allocation10], %s214
          %s217 = ssub.s32 1024, 1024
          %218 = vsyncadd %s212, %s217
          %s219 = smul.addr %s20, 16
          %s220 = smul.addr %s219, 64
          %s221 = scalar_lea.hbm %s2, %s220
          %s222 = sshll.u32 %s215, 4
          %s223 = int_to_ptr.vmem [resolvable:$true] %s222
          %228 = dma.hbm_to_vmem [thread:$0]  %s221, 1024, %s223, %s212, 64, 64, 4
        $region28: #{tpu_custom_call.1} parent=23 // pred_fallthru
          _
        // Predicated region
        $region29: #{tpu_custom_call.1} parent=23 // pred_check
          %p229 = pneg %p127
        $region30: #{tpu_custom_call.1} parent=23 // pred_check_branch
          %231 = sbr.rel (%p229) target = $region32
        $region31: #{tpu_custom_call.1} parent=23 // pred_region
          %p232 = scmp.lt.s32.totalorder %s20, 2
          %s233 = scalar_select %p232, %s20, 2
          %s234 = scalar_lea.vmem %s3, %s233
        $region32: #{tpu_custom_call.1} parent=23 // pred_fallthru
          _
      $region24: #{tpu_custom_call.1} parent=5 // pred_fallthru
        _
      %p235 = scmp.le.s32.totalorder 1, %s13
      %p236 = scmp.lt.s32.totalorder %s13, 4
      %p237 = pnand %p235, %p236
      %p238 = pneg %p237
      // Predicated region
      $region33: #{tpu_custom_call.1} parent=5 // pred_check
        _
      $region34: #{tpu_custom_call.1} parent=5 // pred_check_branch
        %240 = sbr.rel (%p237) target = $region36
      $region35: #{tpu_custom_call.1} parent=5 // pred_region
        %s241 = ssub.s32 %s13, 1
        // Predicated region
        $region37: #{tpu_custom_call.1} parent=35 // pred_check
          %p242 = pneg %p53
        $region38: #{tpu_custom_call.1} parent=35 // pred_check_branch
          %244 = sbr.rel (%p242) target = $region40
        $region39: #{tpu_custom_call.1} parent=35 // pred_region
          %245 = dma.done [#allocation6], 1024
        $region40: #{tpu_custom_call.1} parent=35 // pred_fallthru
          _
        // Predicated region
        $region41: #{tpu_custom_call.1} parent=35 // pred_check
          %p246 = pneg %p81
        $region42: #{tpu_custom_call.1} parent=35 // pred_check_branch
          %248 = sbr.rel (%p246) target = $region44
        $region43: #{tpu_custom_call.1} parent=35 // pred_region
          %249 = dma.done [#allocation9], 1024
        $region44: #{tpu_custom_call.1} parent=35 // pred_fallthru
          _
        %s250 = sand.u32 %s18, 1
        %s251 = scalar_lea.sflag [#allocation6], %s250
        %s252 = sand.u32 %s94, 1
        %s253 = smul.addr %s252, 64
        %s254 = scalar_lea.vmem [#allocation10], %s253
        // Predicated region
        $region45: #{tpu_custom_call.1} parent=35 // pred_check
          %p255 = pneg %p107
        $region46: #{tpu_custom_call.1} parent=35 // pred_check_branch
          %257 = sbr.rel (%p255) target = $region48
        $region47: #{tpu_custom_call.1} parent=35 // pred_region
          %258 = dma.done %s251, 1024
        $region48: #{tpu_custom_call.1} parent=35 // pred_fallthru
          _
        %p259 = pneg %p53
        %p260 = pneg %p50
        %p261 = pneg %p81
        %p262 = pneg %p78
        %s263 = sand.u32 %s18, 1
        %s264 = scalar_lea.sflag [#allocation6], %s263
        %s265 = sand.u32 %s94, 1
        %s266 = smul.addr %s265, 64
        %s267 = scalar_lea.vmem [#allocation10], %s266
        %p268 = pneg %p107
        %p269 = pneg %p104
        %p270 = scmp.lt.s32.totalorder %s23, 2
        %s271 = scalar_select %p270, %s23, 2
        %s272 = scalar_lea.vmem %s3, %s271
        %p273 = pneg %p133
        %p274 = pneg %p130
        %p275 = pneg %p159
        %p276 = pneg %p156
        %s277 = smul.u32 16, %s24
        %p278 = scmp.lt.s32.totalorder %s23, 2
        %s279 = scalar_select %p278, %s23, 2
        %s280 = scalar_lea.vmem %s3, %s279
        %s281 = smul.u32 16, %s24
        %s283 = smul.u32 %s25, 128
        %p284 = scmp.eq.s32.totalorder %s24, 0
        // Predicated region
        $region49: #{tpu_custom_call.1} parent=35 // pred_check
          %p285 = pneg %p284
        $region50: #{tpu_custom_call.1} parent=35 // pred_check_branch
          %287 = sbr.rel (%p285) target = $region52
        $region51: #{tpu_custom_call.1} parent=35 // pred_region
          %p288 = scmp.eq.s32.totalorder %s23, 0
          // Predicated region
          $region53: #{tpu_custom_call.1} parent=51 // pred_check
            %p289 = pneg %p288
          $region54: #{tpu_custom_call.1} parent=51 // pred_check_branch
            %291 = sbr.rel (%p289) target = $region56
          $region55: #{tpu_custom_call.1} parent=51 // pred_region
            %s292 = sshra.s32 %s283, 3
            %s293 = sand.u32 %s283, 7
            %s294 = smul.addr %s292, 4
            %s295 = scalar_lea.vmem [#allocation5], %s294
            %v296 = vld [vmem:[%s295] sm:$0xf]
            %v297 = vld [vmem:[%s295 + $0x4] sm:$0xf]
            %v298 = vld [vmem:[%s295 + $0x8] sm:$0xf]
            %v299 = vld [vmem:[%s295 + $0xc] sm:$0xf]
            %v300 = vld [vmem:[%s295 + $0x10] sm:$0xf]
            %v301 = vld [vmem:[%s295 + $0x14] sm:$0xf]
            %v302 = vld [vmem:[%s295 + $0x18] sm:$0xf]
            %v303 = vld [vmem:[%s295 + $0x1c] sm:$0xf]
            %v304 = vld [vmem:[%s295 + $0x20] sm:$0xf]
            %v305 = vld [vmem:[%s295 + $0x24] sm:$0xf]
            %v306 = vld [vmem:[%s295 + $0x28] sm:$0xf]
            %v307 = vld [vmem:[%s295 + $0x2c] sm:$0xf]
            %v308 = vld [vmem:[%s295 + $0x30] sm:$0xf]
            %v309 = vld [vmem:[%s295 + $0x34] sm:$0xf]
            %v310 = vld [vmem:[%s295 + $0x38] sm:$0xf]
            %v311 = vld [vmem:[%s295 + $0x3c] sm:$0xf]
            %v312 = vld [vmem:[%s254] sm:$0xf]
            %v313 = vld [vmem:[%s254 + $0x4] sm:$0xf]
            %v314 = vld [vmem:[%s254 + $0x8] sm:$0xf]
            %v315 = vld [vmem:[%s254 + $0xc] sm:$0xf]
            %v316 = vld [vmem:[%s254 + $0x10] sm:$0xf]
            %v317 = vld [vmem:[%s254 + $0x14] sm:$0xf]
            %v318 = vld [vmem:[%s254 + $0x18] sm:$0xf]
            %v319 = vld [vmem:[%s254 + $0x1c] sm:$0xf]
            %v320 = vld [vmem:[%s254 + $0x20] sm:$0xf]
            %v321 = vld [vmem:[%s254 + $0x24] sm:$0xf]
            %v322 = vld [vmem:[%s254 + $0x28] sm:$0xf]
            %v323 = vld [vmem:[%s254 + $0x2c] sm:$0xf]
            %v324 = vld [vmem:[%s254 + $0x30] sm:$0xf]
            %v325 = vld [vmem:[%s254 + $0x34] sm:$0xf]
            %v326 = vld [vmem:[%s254 + $0x38] sm:$0xf]
            %v327 = vld [vmem:[%s254 + $0x3c] sm:$0xf]
            %v344 = vunpack.c.l.b16 %v296
            %v345 = vunpack.c.l.b16 %v297
            %v346 = vunpack.c.l.b16 %v298
            %v347 = vunpack.c.l.b16 %v299
            %v348 = vunpack.c.l.b16 %v300
            %v349 = vunpack.c.l.b16 %v301
            %v350 = vunpack.c.l.b16 %v302
            %v351 = vunpack.c.l.b16 %v303
            %v352 = vunpack.c.l.b16 %v304
            %v353 = vunpack.c.l.b16 %v305
            %v354 = vunpack.c.l.b16 %v306
            %v355 = vunpack.c.l.b16 %v307
            %v356 = vunpack.c.l.b16 %v308
            %v357 = vunpack.c.l.b16 %v309
            %v358 = vunpack.c.l.b16 %v310
            %v359 = vunpack.c.l.b16 %v311
            %v360 = vpack.c.b16 %v345, %v344
            %v361 = vpack.c.b16 %v347, %v346
            %v362 = vpack.c.b16 %v349, %v348
            %v363 = vpack.c.b16 %v351, %v350
            %v364 = vpack.c.b16 %v353, %v352
            %v365 = vpack.c.b16 %v355, %v354
            %v366 = vpack.c.b16 %v357, %v356
            %v367 = vpack.c.b16 %v359, %v358
            %v392 = vunpack.c.l.b16 %v312
            %v393 = vunpack.c.l.b16 %v313
            %v394 = vunpack.c.l.b16 %v314
            %v395 = vunpack.c.l.b16 %v315
            %v396 = vunpack.c.l.b16 %v316
            %v397 = vunpack.c.l.b16 %v317
            %v398 = vunpack.c.l.b16 %v318
            %v399 = vunpack.c.l.b16 %v319
            %v400 = vunpack.c.l.b16 %v320
            %v401 = vunpack.c.l.b16 %v321
            %v402 = vunpack.c.l.b16 %v322
            %v403 = vunpack.c.l.b16 %v323
            %v404 = vunpack.c.l.b16 %v324
            %v405 = vunpack.c.l.b16 %v325
            %v406 = vunpack.c.l.b16 %v326
            %v407 = vunpack.c.l.b16 %v327
            %v408 = vpack.c.b16 %v393, %v392
            %v409 = vpack.c.b16 %v395, %v394
            %v410 = vpack.c.b16 %v397, %v396
            %v411 = vpack.c.b16 %v399, %v398
            %v412 = vpack.c.b16 %v401, %v400
            %v413 = vpack.c.b16 %v403, %v402
            %v414 = vpack.c.b16 %v405, %v404
            %v415 = vpack.c.b16 %v407, %v406
            %424 = vmatprep.subr.bf16.mxu0 0
            %425 = vmatpush1.bf16.msra.mxu0 %v408
            %426 = vmatprep.subr.bf16.mxu0 0
            %427 = vmatpush1.bf16.msra.mxu0 %v409
            %428 = vmatprep.subr.bf16.mxu0 0
            %429 = vmatpush1.bf16.msra.mxu0 %v410
            %430 = vmatprep.subr.bf16.mxu0 0
            %431 = vmatpush1.bf16.msra.mxu0 %v411
            %432 = vmatprep.subr.bf16.mxu0 0
            %433 = vmatpush1.bf16.msra.mxu0 %v412
            %434 = vmatprep.subr.bf16.mxu0 0
            %435 = vmatpush1.bf16.msra.mxu0 %v413
            %436 = vmatprep.subr.bf16.mxu0 0
            %437 = vmatpush1.bf16.msra.mxu0 %v414
            %438 = vmatprep.subr.bf16.mxu0 0
            %439 = vmatpush1.bf16.msra.mxu0 %v415
            %440 = vmatprep.subr.bf16.mxu0 0
            %441 = vmatpush1.bf16.msra.mxu0 0
            %442 = vmatprep.subr.bf16.mxu0 0
            %443 = vmatpush1.bf16.msra.mxu0 0
            %444 = vmatprep.subr.bf16.mxu0 0
            %445 = vmatpush1.bf16.msra.mxu0 0
            %446 = vmatprep.subr.bf16.mxu0 0
            %447 = vmatpush1.bf16.msra.mxu0 0
            %448 = vmatprep.subr.bf16.mxu0 0
            %449 = vmatpush1.bf16.msra.mxu0 0
            %450 = vmatprep.subr.bf16.mxu0 0
            %451 = vmatpush1.bf16.msra.mxu0 0
            %452 = vmatprep.subr.bf16.mxu0 0
            %453 = vmatpush1.bf16.msra.mxu0 0
            %454 = vmatprep.subr.bf16.mxu0 0
            %455 = vmatpush1.bf16.msra.mxu0 0
            %456 = vmatprep.mubr.bf16.mxu0 0
            %457 = vmatmul.mubr.bf16.gmra.mrb[0].mxu0 %v360
            %v458 = vpop.f32.mrb[0].mxu0
            %v459 = vadd.f32 0.0, %v458
            %v460 = vpop.f32.mrb[0].mxu0
            %v461 = vpop.f32.mrb[0].mxu0
            %v462 = vadd.f32 0.0, %v461
            %v463 = vpop.f32.mrb[0].mxu0
            %464 = vmatprep.mubr.bf16.mxu0 0
            %465 = vmatmul.mubr.bf16.gmra.mrb[0].mxu0 %v361
            %v466 = vpop.f32.mrb[0].mxu0
            %v467 = vadd.f32 0.0, %v466
            %v468 = vpop.f32.mrb[0].mxu0
            %v469 = vpop.f32.mrb[0].mxu0
            %v470 = vadd.f32 0.0, %v469
            %v471 = vpop.f32.mrb[0].mxu0
            %472 = vmatprep.mubr.bf16.mxu0 0
            %473 = vmatmul.mubr.bf16.gmra.mrb[0].mxu0 %v362
            %v474 = vpop.f32.mrb[0].mxu0
            %v475 = vadd.f32 0.0, %v474
            %v476 = vpop.f32.mrb[0].mxu0
            %v477 = vpop.f32.mrb[0].mxu0
            %v478 = vadd.f32 0.0, %v477
            %v479 = vpop.f32.mrb[0].mxu0
            %480 = vmatprep.mubr.bf16.mxu0 0
            %481 = vmatmul.mubr.bf16.gmra.mrb[0].mxu0 %v363
            %v482 = vpop.f32.mrb[0].mxu0
            %v483 = vadd.f32 0.0, %v482
            %v484 = vpop.f32.mrb[0].mxu0
            %v485 = vpop.f32.mrb[0].mxu0
            %v486 = vadd.f32 0.0, %v485
            %v487 = vpop.f32.mrb[0].mxu0
            %488 = vmatprep.mubr.bf16.mxu0 0
            %489 = vmatmul.mubr.bf16.gmra.mrb[0].mxu0 %v364
            %v490 = vpop.f32.mrb[0].mxu0
            %v491 = vadd.f32 0.0, %v490
            %v492 = vpop.f32.mrb[0].mxu0
            %v493 = vpop.f32.mrb[0].mxu0
            %v494 = vadd.f32 0.0, %v493
            %v495 = vpop.f32.mrb[0].mxu0
            %496 = vmatprep.mubr.bf16.mxu0 0
            %497 = vmatmul.mubr.bf16.gmra.mrb[0].mxu0 %v365
            %v498 = vpop.f32.mrb[0].mxu0
            %v499 = vadd.f32 0.0, %v498
            %v500 = vpop.f32.mrb[0].mxu0
            %v501 = vpop.f32.mrb[0].mxu0
            %v502 = vadd.f32 0.0, %v501
            %v503 = vpop.f32.mrb[0].mxu0
            %504 = vmatprep.mubr.bf16.mxu0 0
            %505 = vmatmul.mubr.bf16.gmra.mrb[0].mxu0 %v366
            %v506 = vpop.f32.mrb[0].mxu0
            %v507 = vadd.f32 0.0, %v506
            %v508 = vpop.f32.mrb[0].mxu0
            %v509 = vpop.f32.mrb[0].mxu0
            %v510 = vadd.f32 0.0, %v509
            %v511 = vpop.f32.mrb[0].mxu0
            %512 = vmatprep.mubr.bf16.mxu0 0
            %513 = vmatmul.mubr.bf16.gmra.mrb[0].mxu0 %v367
            %v514 = vpop.f32.mrb[0].mxu0
            %v515 = vadd.f32 0.0, %v514
            %v516 = vpop.f32.mrb[0].mxu0
            %v517 = vpop.f32.mrb[0].mxu0
            %v518 = vadd.f32 0.0, %v517
            %v519 = vpop.f32.mrb[0].mxu0
            %520 = vdwg.mxu0
            %v521 = vpack.c.bf16 %v462, %v459
            %v522 = vpack.c.bf16 %v470, %v467
            %v523 = vpack.c.bf16 %v478, %v475
            %v524 = vpack.c.bf16 %v486, %v483
            %v525 = vpack.c.bf16 %v494, %v491
            %v526 = vpack.c.bf16 %v502, %v499
            %v527 = vpack.c.bf16 %v510, %v507
            %v528 = vpack.c.bf16 %v518, %v515
            %s529 = sshra.s32 %s283, 4
            %s530 = sand.u32 %s283, 15
            %s531 = smul.addr %s529, 8
            %s532 = scalar_lea.vmem [#allocation3], %s531
            %533 = vst [vmem:[%s532] sm:$0xff] %v521
            %534 = vst [vmem:[%s532 + $0x8] sm:$0xff] %v522
            %535 = vst [vmem:[%s532 + $0x10] sm:$0xff] %v523
            %536 = vst [vmem:[%s532 + $0x18] sm:$0xff] %v524
            %537 = vst [vmem:[%s532 + $0x20] sm:$0xff] %v525
            %538 = vst [vmem:[%s532 + $0x28] sm:$0xff] %v526
            %539 = vst [vmem:[%s532 + $0x30] sm:$0xff] %v527
            %540 = vst [vmem:[%s532 + $0x38] sm:$0xff] %v528
          $region56: #{tpu_custom_call.1} parent=51 // pred_fallthru
            _
          %p541 = scmp.gt.s32.totalorder %s23, 0
          // Predicated region
          $region57: #{tpu_custom_call.1} parent=51 // pred_check
            %p542 = pneg %p541
          $region58: #{tpu_custom_call.1} parent=51 // pred_check_branch
            %544 = sbr.rel (%p542) target = $region60
          $region59: #{tpu_custom_call.1} parent=51 // pred_region
            %s545 = sshra.s32 %s283, 4
            %s546 = sand.u32 %s283, 15
            %s547 = smul.addr %s545, 8
            %s548 = scalar_lea.vmem [#allocation2], %s547
            %v549 = vld [vmem:[%s548] sm:$0xff]
            %v550 = vld [vmem:[%s548 + $0x8] sm:$0xff]
            %v551 = vld [vmem:[%s548 + $0x10] sm:$0xff]
            %v552 = vld [vmem:[%s548 + $0x18] sm:$0xff]
            %v553 = vld [vmem:[%s548 + $0x20] sm:$0xff]
            %v554 = vld [vmem:[%s548 + $0x28] sm:$0xff]
            %v555 = vld [vmem:[%s548 + $0x30] sm:$0xff]
            %v556 = vld [vmem:[%s548 + $0x38] sm:$0xff]
            %v557 = vld [vmem:[%s254] sm:$0xf]
            %v558 = vld [vmem:[%s254 + $0x4] sm:$0xf]
            %v559 = vld [vmem:[%s254 + $0x8] sm:$0xf]
            %v560 = vld [vmem:[%s254 + $0xc] sm:$0xf]
            %v561 = vld [vmem:[%s254 + $0x10] sm:$0xf]
            %v562 = vld [vmem:[%s254 + $0x14] sm:$0xf]
            %v563 = vld [vmem:[%s254 + $0x18] sm:$0xf]
            %v564 = vld [vmem:[%s254 + $0x1c] sm:$0xf]
            %v565 = vld [vmem:[%s254 + $0x20] sm:$0xf]
            %v566 = vld [vmem:[%s254 + $0x24] sm:$0xf]
            %v567 = vld [vmem:[%s254 + $0x28] sm:$0xf]
            %v568 = vld [vmem:[%s254 + $0x2c] sm:$0xf]
            %v569 = vld [vmem:[%s254 + $0x30] sm:$0xf]
            %v570 = vld [vmem:[%s254 + $0x34] sm:$0xf]
            %v571 = vld [vmem:[%s254 + $0x38] sm:$0xf]
            %v572 = vld [vmem:[%s254 + $0x3c] sm:$0xf]
            %v589 = vunpack.c.l.b16 %v557
            %v590 = vunpack.c.l.b16 %v558
            %v591 = vunpack.c.l.b16 %v559
            %v592 = vunpack.c.l.b16 %v560
            %v593 = vunpack.c.l.b16 %v561
            %v594 = vunpack.c.l.b16 %v562
            %v595 = vunpack.c.l.b16 %v563
            %v596 = vunpack.c.l.b16 %v564
            %v597 = vunpack.c.l.b16 %v565
            %v598 = vunpack.c.l.b16 %v566
            %v599 = vunpack.c.l.b16 %v567
            %v600 = vunpack.c.l.b16 %v568
            %v601 = vunpack.c.l.b16 %v569
            %v602 = vunpack.c.l.b16 %v570
            %v603 = vunpack.c.l.b16 %v571
            %v604 = vunpack.c.l.b16 %v572
            %v605 = vpack.c.b16 %v590, %v589
            %v606 = vpack.c.b16 %v592, %v591
            %v607 = vpack.c.b16 %v594, %v593
            %v608 = vpack.c.b16 %v596, %v595
            %v609 = vpack.c.b16 %v598, %v597
            %v610 = vpack.c.b16 %v600, %v599
            %v611 = vpack.c.b16 %v602, %v601
            %v612 = vpack.c.b16 %v604, %v603
            %621 = vmatprep.subr.bf16.mxu0 0
            %622 = vmatpush1.bf16.msra.mxu0 %v605
            %623 = vmatprep.subr.bf16.mxu0 0
            %624 = vmatpush1.bf16.msra.mxu0 %v606
            %625 = vmatprep.subr.bf16.mxu0 0
            %626 = vmatpush1.bf16.msra.mxu0 %v607
            %627 = vmatprep.subr.bf16.mxu0 0
            %628 = vmatpush1.bf16.msra.mxu0 %v608
            %629 = vmatprep.subr.bf16.mxu0 0
            %630 = vmatpush1.bf16.msra.mxu0 %v609
            %631 = vmatprep.subr.bf16.mxu0 0
            %632 = vmatpush1.bf16.msra.mxu0 %v610
            %633 = vmatprep.subr.bf16.mxu0 0
            %634 = vmatpush1.bf16.msra.mxu0 %v611
            %635 = vmatprep.subr.bf16.mxu0 0
            %636 = vmatpush1.bf16.msra.mxu0 %v612
            %637 = vmatprep.subr.bf16.mxu0 0
            %638 = vmatpush1.bf16.msra.mxu0 0
            %639 = vmatprep.subr.bf16.mxu0 0
            %640 = vmatpush1.bf16.msra.mxu0 0
            %641 = vmatprep.subr.bf16.mxu0 0
            %642 = vmatpush1.bf16.msra.mxu0 0
            %643 = vmatprep.subr.bf16.mxu0 0
            %644 = vmatpush1.bf16.msra.mxu0 0
            %645 = vmatprep.subr.bf16.mxu0 0
            %646 = vmatpush1.bf16.msra.mxu0 0
            %647 = vmatprep.subr.bf16.mxu0 0
            %648 = vmatpush1.bf16.msra.mxu0 0
            %649 = vmatprep.subr.bf16.mxu0 0
            %650 = vmatpush1.bf16.msra.mxu0 0
            %651 = vmatprep.subr.bf16.mxu0 0
            %652 = vmatpush1.bf16.msra.mxu0 0
            %653 = vmatprep.mubr.bf16.mxu0 0
            %654 = vmatmul.mubr.bf16.gmra.mrb[0].mxu0 %v549
            %v655 = vpop.f32.mrb[0].mxu0
            %v656 = vadd.f32 0.0, %v655
            %v657 = vpop.f32.mrb[0].mxu0
            %v658 = vpop.f32.mrb[0].mxu0
            %v659 = vadd.f32 0.0, %v658
            %v660 = vpop.f32.mrb[0].mxu0
            %661 = vmatprep.mubr.bf16.mxu0 0
            %662 = vmatmul.mubr.bf16.gmra.mrb[0].mxu0 %v550
            %v663 = vpop.f32.mrb[0].mxu0
            %v664 = vadd.f32 0.0, %v663
            %v665 = vpop.f32.mrb[0].mxu0
            %v666 = vpop.f32.mrb[0].mxu0
            %v667 = vadd.f32 0.0, %v666
            %v668 = vpop.f32.mrb[0].mxu0
            %669 = vmatprep.mubr.bf16.mxu0 0
            %670 = vmatmul.mubr.bf16.gmra.mrb[0].mxu0 %v551
            %v671 = vpop.f32.mrb[0].mxu0
            %v672 = vadd.f32 0.0, %v671
            %v673 = vpop.f32.mrb[0].mxu0
            %v674 = vpop.f32.mrb[0].mxu0
            %v675 = vadd.f32 0.0, %v674
            %v676 = vpop.f32.mrb[0].mxu0
            %677 = vmatprep.mubr.bf16.mxu0 0
            %678 = vmatmul.mubr.bf16.gmra.mrb[0].mxu0 %v552
            %v679 = vpop.f32.mrb[0].mxu0
            %v680 = vadd.f32 0.0, %v679
            %v681 = vpop.f32.mrb[0].mxu0
            %v682 = vpop.f32.mrb[0].mxu0
            %v683 = vadd.f32 0.0, %v682
            %v684 = vpop.f32.mrb[0].mxu0
            %685 = vmatprep.mubr.bf16.mxu0 0
            %686 = vmatmul.mubr.bf16.gmra.mrb[0].mxu0 %v553
            %v687 = vpop.f32.mrb[0].mxu0
            %v688 = vadd.f32 0.0, %v687
            %v689 = vpop.f32.mrb[0].mxu0
            %v690 = vpop.f32.mrb[0].mxu0
            %v691 = vadd.f32 0.0, %v690
            %v692 = vpop.f32.mrb[0].mxu0
            %693 = vmatprep.mubr.bf16.mxu0 0
            %694 = vmatmul.mubr.bf16.gmra.mrb[0].mxu0 %v554
            %v695 = vpop.f32.mrb[0].mxu0
            %v696 = vadd.f32 0.0, %v695
            %v697 = vpop.f32.mrb[0].mxu0
            %v698 = vpop.f32.mrb[0].mxu0
            %v699 = vadd.f32 0.0, %v698
            %v700 = vpop.f32.mrb[0].mxu0
            %701 = vmatprep.mubr.bf16.mxu0 0
            %702 = vmatmul.mubr.bf16.gmra.mrb[0].mxu0 %v555
            %v703 = vpop.f32.mrb[0].mxu0
            %v704 = vadd.f32 0.0, %v703
            %v705 = vpop.f32.mrb[0].mxu0
            %v706 = vpop.f32.mrb[0].mxu0
            %v707 = vadd.f32 0.0, %v706
            %v708 = vpop.f32.mrb[0].mxu0
            %709 = vmatprep.mubr.bf16.mxu0 0
            %710 = vmatmul.mubr.bf16.gmra.mrb[0].mxu0 %v556
            %v711 = vpop.f32.mrb[0].mxu0
            %v712 = vadd.f32 0.0, %v711
            %v713 = vpop.f32.mrb[0].mxu0
            %v714 = vpop.f32.mrb[0].mxu0
            %v715 = vadd.f32 0.0, %v714
            %v716 = vpop.f32.mrb[0].mxu0
            %717 = vdwg.mxu0
            %v718 = vpack.c.bf16 %v659, %v656
            %v719 = vpack.c.bf16 %v667, %v664
            %v720 = vpack.c.bf16 %v675, %v672
            %v721 = vpack.c.bf16 %v683, %v680
            %v722 = vpack.c.bf16 %v691, %v688
            %v723 = vpack.c.bf16 %v699, %v696
            %v724 = vpack.c.bf16 %v707, %v704
            %v725 = vpack.c.bf16 %v715, %v712
            %s726 = smul.addr %s545, 8
            %s727 = scalar_lea.vmem [#allocation3], %s726
            %728 = vst [vmem:[%s727] sm:$0xff] %v718
            %729 = vst [vmem:[%s727 + $0x8] sm:$0xff] %v719
            %730 = vst [vmem:[%s727 + $0x10] sm:$0xff] %v720
            %731 = vst [vmem:[%s727 + $0x18] sm:$0xff] %v721
            %732 = vst [vmem:[%s727 + $0x20] sm:$0xff] %v722
            %733 = vst [vmem:[%s727 + $0x28] sm:$0xff] %v723
            %734 = vst [vmem:[%s727 + $0x30] sm:$0xff] %v724
            %735 = vst [vmem:[%s727 + $0x38] sm:$0xff] %v725
          $region60: #{tpu_custom_call.1} parent=51 // pred_fallthru
            _
        $region52: #{tpu_custom_call.1} parent=35 // pred_fallthru
          _
        %p736 = scmp.eq.s32.totalorder %s25, 0
        // Predicated region
        $region61: #{tpu_custom_call.1} parent=35 // pred_check
          %p737 = pneg %p736
        $region62: #{tpu_custom_call.1} parent=35 // pred_check_branch
          %739 = sbr.rel (%p737) target = $region64
        $region63: #{tpu_custom_call.1} parent=35 // pred_region
          %740 = vst [vmem:[#allocation4] sm:$0xff] 0.0
          %741 = vst [vmem:[#allocation4 + $0x8] sm:$0xff] 0.0
          %742 = vst [vmem:[#allocation4 + $0x10] sm:$0xff] 0.0
          %743 = vst [vmem:[#allocation4 + $0x18] sm:$0xff] 0.0
          %744 = vst [vmem:[#allocation4 + $0x20] sm:$0xff] 0.0
          %745 = vst [vmem:[#allocation4 + $0x28] sm:$0xff] 0.0
          %746 = vst [vmem:[#allocation4 + $0x30] sm:$0xff] 0.0
          %747 = vst [vmem:[#allocation4 + $0x38] sm:$0xff] 0.0
          %748 = vst [vmem:[#allocation4 + $0x40] sm:$0xff] 0.0
          %749 = vst [vmem:[#allocation4 + $0x48] sm:$0xff] 0.0
          %750 = vst [vmem:[#allocation4 + $0x50] sm:$0xff] 0.0
          %751 = vst [vmem:[#allocation4 + $0x58] sm:$0xff] 0.0
          %752 = vst [vmem:[#allocation4 + $0x60] sm:$0xff] 0.0
          %753 = vst [vmem:[#allocation4 + $0x68] sm:$0xff] 0.0
          %754 = vst [vmem:[#allocation4 + $0x70] sm:$0xff] 0.0
          %755 = vst [vmem:[#allocation4 + $0x78] sm:$0xff] 0.0
        $region64: #{tpu_custom_call.1} parent=35 // pred_fallthru
          _
        %v756 = vld [vmem:[#allocation4] sm:$0xff]
        %v757 = vld [vmem:[#allocation4 + $0x8] sm:$0xff]
        %v758 = vld [vmem:[#allocation4 + $0x10] sm:$0xff]
        %v759 = vld [vmem:[#allocation4 + $0x18] sm:$0xff]
        %v760 = vld [vmem:[#allocation4 + $0x20] sm:$0xff]
        %v761 = vld [vmem:[#allocation4 + $0x28] sm:$0xff]
        %v762 = vld [vmem:[#allocation4 + $0x30] sm:$0xff]
        %v763 = vld [vmem:[#allocation4 + $0x38] sm:$0xff]
        %v764 = vld [vmem:[#allocation4 + $0x40] sm:$0xff]
        %v765 = vld [vmem:[#allocation4 + $0x48] sm:$0xff]
        %v766 = vld [vmem:[#allocation4 + $0x50] sm:$0xff]
        %v767 = vld [vmem:[#allocation4 + $0x58] sm:$0xff]
        %v768 = vld [vmem:[#allocation4 + $0x60] sm:$0xff]
        %v769 = vld [vmem:[#allocation4 + $0x68] sm:$0xff]
        %v770 = vld [vmem:[#allocation4 + $0x70] sm:$0xff]
        %v771 = vld [vmem:[#allocation4 + $0x78] sm:$0xff]
        %v772 = vld [vmem:[#allocation8] sm:$0xf]
        %v773 = vld [vmem:[#allocation8 + $0x4] sm:$0xf]
        %v774 = vld [vmem:[#allocation8 + $0x8] sm:$0xf]
        %v775 = vld [vmem:[#allocation8 + $0xc] sm:$0xf]
        %v776 = vld [vmem:[#allocation8 + $0x10] sm:$0xf]
        %v777 = vld [vmem:[#allocation8 + $0x14] sm:$0xf]
        %v778 = vld [vmem:[#allocation8 + $0x18] sm:$0xf]
        %v779 = vld [vmem:[#allocation8 + $0x1c] sm:$0xf]
        %v780 = vld [vmem:[#allocation8 + $0x20] sm:$0xf]
        %v781 = vld [vmem:[#allocation8 + $0x24] sm:$0xf]
        %v782 = vld [vmem:[#allocation8 + $0x28] sm:$0xf]
        %v783 = vld [vmem:[#allocation8 + $0x2c] sm:$0xf]
        %v784 = vld [vmem:[#allocation8 + $0x30] sm:$0xf]
        %v785 = vld [vmem:[#allocation8 + $0x34] sm:$0xf]
        %v786 = vld [vmem:[#allocation8 + $0x38] sm:$0xf]
        %v787 = vld [vmem:[#allocation8 + $0x3c] sm:$0xf]
        %s788 = sshra.s32 %s283, 4
        %s789 = sand.u32 %s283, 15
        %s790 = smul.addr %s788, 8
        %s791 = scalar_lea.vmem [#allocation3], %s790
        %v792 = vld [vmem:[%s791] sm:$0xff]
        %v793 = vld [vmem:[%s791 + $0x8] sm:$0xff]
        %v794 = vld [vmem:[%s791 + $0x10] sm:$0xff]
        %v795 = vld [vmem:[%s791 + $0x18] sm:$0xff]
        %v796 = vld [vmem:[%s791 + $0x20] sm:$0xff]
        %v797 = vld [vmem:[%s791 + $0x28] sm:$0xff]
        %v798 = vld [vmem:[%s791 + $0x30] sm:$0xff]
        %v799 = vld [vmem:[%s791 + $0x38] sm:$0xff]
        %v816 = vunpack.c.l.b16 %v772
        %v817 = vunpack.c.l.b16 %v773
        %v818 = vunpack.c.l.b16 %v774
        %v819 = vunpack.c.l.b16 %v775
        %v820 = vunpack.c.l.b16 %v776
        %v821 = vunpack.c.l.b16 %v777
        %v822 = vunpack.c.l.b16 %v778
        %v823 = vunpack.c.l.b16 %v779
        %v824 = vunpack.c.l.b16 %v780
        %v825 = vunpack.c.l.b16 %v781
        %v826 = vunpack.c.l.b16 %v782
        %v827 = vunpack.c.l.b16 %v783
        %v828 = vunpack.c.l.b16 %v784
        %v829 = vunpack.c.l.b16 %v785
        %v830 = vunpack.c.l.b16 %v786
        %v831 = vunpack.c.l.b16 %v787
        %v832 = vpack.c.b16 %v817, %v816
        %v833 = vpack.c.b16 %v819, %v818
        %v834 = vpack.c.b16 %v821, %v820
        %v835 = vpack.c.b16 %v823, %v822
        %v836 = vpack.c.b16 %v825, %v824
        %v837 = vpack.c.b16 %v827, %v826
        %v838 = vpack.c.b16 %v829, %v828
        %v839 = vpack.c.b16 %v831, %v830
        %848 = vmatprep.subr.bf16.mxu0 0
        %849 = vmatpush1.bf16.msra.mxu0 %v792
        %850 = vmatprep.subr.bf16.mxu0 0
        %851 = vmatpush1.bf16.msra.mxu0 %v793
        %852 = vmatprep.subr.bf16.mxu0 0
        %853 = vmatpush1.bf16.msra.mxu0 %v794
        %854 = vmatprep.subr.bf16.mxu0 0
        %855 = vmatpush1.bf16.msra.mxu0 %v795
        %856 = vmatprep.subr.bf16.mxu0 0
        %857 = vmatpush1.bf16.msra.mxu0 %v796
        %858 = vmatprep.subr.bf16.mxu0 0
        %859 = vmatpush1.bf16.msra.mxu0 %v797
        %860 = vmatprep.subr.bf16.mxu0 0
        %861 = vmatpush1.bf16.msra.mxu0 %v798
        %862 = vmatprep.subr.bf16.mxu0 0
        %863 = vmatpush1.bf16.msra.mxu0 %v799
        %864 = vmatprep.subr.bf16.mxu0 0
        %865 = vmatpush1.bf16.msra.mxu0 0
        %866 = vmatprep.subr.bf16.mxu0 0
        %867 = vmatpush1.bf16.msra.mxu0 0
        %868 = vmatprep.subr.bf16.mxu0 0
        %869 = vmatpush1.bf16.msra.mxu0 0
        %870 = vmatprep.subr.bf16.mxu0 0
        %871 = vmatpush1.bf16.msra.mxu0 0
        %872 = vmatprep.subr.bf16.mxu0 0
        %873 = vmatpush1.bf16.msra.mxu0 0
        %874 = vmatprep.subr.bf16.mxu0 0
        %875 = vmatpush1.bf16.msra.mxu0 0
        %876 = vmatprep.subr.bf16.mxu0 0
        %877 = vmatpush1.bf16.msra.mxu0 0
        %878 = vmatprep.subr.bf16.mxu0 0
        %879 = vmatpush1.bf16.msra.mxu0 0
        %880 = vmatprep.mubr.bf16.mxu0 0
        %881 = vmatmul.mubr.bf16.gmra.mrb[0].mxu0 %v832
        %v882 = vpop.f32.mrb[0].mxu0
        %v883 = vadd.f32 0.0, %v882
        %v884 = vpop.f32.mrb[0].mxu0
        %v885 = vpop.f32.mrb[0].mxu0
        %v886 = vadd.f32 0.0, %v885
        %v887 = vpop.f32.mrb[0].mxu0
        %888 = vmatprep.mubr.bf16.mxu0 0
        %889 = vmatmul.mubr.bf16.gmra.mrb[0].mxu0 %v833
        %v890 = vpop.f32.mrb[0].mxu0
        %v891 = vadd.f32 0.0, %v890
        %v892 = vpop.f32.mrb[0].mxu0
        %v893 = vpop.f32.mrb[0].mxu0
        %v894 = vadd.f32 0.0, %v893
        %v895 = vpop.f32.mrb[0].mxu0
        %896 = vmatprep.mubr.bf16.mxu0 0
        %897 = vmatmul.mubr.bf16.gmra.mrb[0].mxu0 %v834
        %v898 = vpop.f32.mrb[0].mxu0
        %v899 = vadd.f32 0.0, %v898
        %v900 = vpop.f32.mrb[0].mxu0
        %v901 = vpop.f32.mrb[0].mxu0
        %v902 = vadd.f32 0.0, %v901
        %v903 = vpop.f32.mrb[0].mxu0
        %904 = vmatprep.mubr.bf16.mxu0 0
        %905 = vmatmul.mubr.bf16.gmra.mrb[0].mxu0 %v835
        %v906 = vpop.f32.mrb[0].mxu0
        %v907 = vadd.f32 0.0, %v906
        %v908 = vpop.f32.mrb[0].mxu0
        %v909 = vpop.f32.mrb[0].mxu0
        %v910 = vadd.f32 0.0, %v909
        %v911 = vpop.f32.mrb[0].mxu0
        %912 = vmatprep.mubr.bf16.mxu0 0
        %913 = vmatmul.mubr.bf16.gmra.mrb[0].mxu0 %v836
        %v914 = vpop.f32.mrb[0].mxu0
        %v915 = vadd.f32 0.0, %v914
        %v916 = vpop.f32.mrb[0].mxu0
        %v917 = vpop.f32.mrb[0].mxu0
        %v918 = vadd.f32 0.0, %v917
        %v919 = vpop.f32.mrb[0].mxu0
        %920 = vmatprep.mubr.bf16.mxu0 0
        %921 = vmatmul.mubr.bf16.gmra.mrb[0].mxu0 %v837
        %v922 = vpop.f32.mrb[0].mxu0
        %v923 = vadd.f32 0.0, %v922
        %v924 = vpop.f32.mrb[0].mxu0
        %v925 = vpop.f32.mrb[0].mxu0
        %v926 = vadd.f32 0.0, %v925
        %v927 = vpop.f32.mrb[0].mxu0
        %928 = vmatprep.mubr.bf16.mxu0 0
        %929 = vmatmul.mubr.bf16.gmra.mrb[0].mxu0 %v838
        %v930 = vpop.f32.mrb[0].mxu0
        %v931 = vadd.f32 0.0, %v930
        %v932 = vpop.f32.mrb[0].mxu0
        %v933 = vpop.f32.mrb[0].mxu0
        %v934 = vadd.f32 0.0, %v933
        %v935 = vpop.f32.mrb[0].mxu0
        %936 = vmatprep.mubr.bf16.mxu0 0
        %937 = vmatmul.mubr.bf16.gmra.mrb[0].mxu0 %v839
        %v938 = vpop.f32.mrb[0].mxu0
        %v939 = vadd.f32 0.0, %v938
        %v940 = vpop.f32.mrb[0].mxu0
        %v941 = vpop.f32.mrb[0].mxu0
        %v942 = vadd.f32 0.0, %v941
        %v943 = vpop.f32.mrb[0].mxu0
        %944 = vdwg.mxu0
        %v945 = vadd.f32 %v756, %v883
        %v946 = vadd.f32 %v757, %v886
        %v947 = vadd.f32 %v758, %v891
        %v948 = vadd.f32 %v759, %v894
        %v949 = vadd.f32 %v760, %v899
        %v950 = vadd.f32 %v761, %v902
        %v951 = vadd.f32 %v762, %v907
        %v952 = vadd.f32 %v763, %v910
        %v953 = vadd.f32 %v764, %v915
        %v954 = vadd.f32 %v765, %v918
        %v955 = vadd.f32 %v766, %v923
        %v956 = vadd.f32 %v767, %v926
        %v957 = vadd.f32 %v768, %v931
        %v958 = vadd.f32 %v769, %v934
        %v959 = vadd.f32 %v770, %v939
        %v960 = vadd.f32 %v771, %v942
        %961 = vst [vmem:[#allocation4] sm:$0xff] %v945
        %962 = vst [vmem:[#allocation4 + $0x8] sm:$0xff] %v946
        %963 = vst [vmem:[#allocation4 + $0x10] sm:$0xff] %v947
        %964 = vst [vmem:[#allocation4 + $0x18] sm:$0xff] %v948
        %965 = vst [vmem:[#allocation4 + $0x20] sm:$0xff] %v949
        %966 = vst [vmem:[#allocation4 + $0x28] sm:$0xff] %v950
        %967 = vst [vmem:[#allocation4 + $0x30] sm:$0xff] %v951
        %968 = vst [vmem:[#allocation4 + $0x38] sm:$0xff] %v952
        %969 = vst [vmem:[#allocation4 + $0x40] sm:$0xff] %v953
        %970 = vst [vmem:[#allocation4 + $0x48] sm:$0xff] %v954
        %971 = vst [vmem:[#allocation4 + $0x50] sm:$0xff] %v955
        %972 = vst [vmem:[#allocation4 + $0x58] sm:$0xff] %v956
        %973 = vst [vmem:[#allocation4 + $0x60] sm:$0xff] %v957
        %974 = vst [vmem:[#allocation4 + $0x68] sm:$0xff] %v958
        %975 = vst [vmem:[#allocation4 + $0x70] sm:$0xff] %v959
        %976 = vst [vmem:[#allocation4 + $0x78] sm:$0xff] %v960
        // Predicated region
        $region65: #{tpu_custom_call.1} parent=35 // pred_check
          %p977 = pneg %p736
        $region66: #{tpu_custom_call.1} parent=35 // pred_check_branch
          %979 = sbr.rel (%p977) target = $region68
        $region67: #{tpu_custom_call.1} parent=35 // pred_region
          %v980 = vld [vmem:[#allocation4] sm:$0xff]
          %v981 = vld [vmem:[#allocation4 + $0x8] sm:$0xff]
          %v982 = vld [vmem:[#allocation4 + $0x10] sm:$0xff]
          %v983 = vld [vmem:[#allocation4 + $0x18] sm:$0xff]
          %v984 = vld [vmem:[#allocation4 + $0x20] sm:$0xff]
          %v985 = vld [vmem:[#allocation4 + $0x28] sm:$0xff]
          %v986 = vld [vmem:[#allocation4 + $0x30] sm:$0xff]
          %v987 = vld [vmem:[#allocation4 + $0x38] sm:$0xff]
          %v988 = vld [vmem:[#allocation4 + $0x40] sm:$0xff]
          %v989 = vld [vmem:[#allocation4 + $0x48] sm:$0xff]
          %v990 = vld [vmem:[#allocation4 + $0x50] sm:$0xff]
          %v991 = vld [vmem:[#allocation4 + $0x58] sm:$0xff]
          %v992 = vld [vmem:[#allocation4 + $0x60] sm:$0xff]
          %v993 = vld [vmem:[#allocation4 + $0x68] sm:$0xff]
          %v994 = vld [vmem:[#allocation4 + $0x70] sm:$0xff]
          %v995 = vld [vmem:[#allocation4 + $0x78] sm:$0xff]
          %v996 = vld [vmem:[%s280] sm:$0x1]
          %v998 = vlaneseq
          %v999 = vshrl.u32 %v998, 7
          %v1000 = vsub.s32 0, %v999
          %v1001 = vrot.slane %v996, %v1000
          %v1003 = vadd.f32 %v980, %v1001
          %v1004 = vadd.f32 %v981, %v1001
          %v1005 = vadd.f32 %v982, %v1001
          %v1006 = vadd.f32 %v983, %v1001
          %v1007 = vadd.f32 %v984, %v1001
          %v1008 = vadd.f32 %v985, %v1001
          %v1009 = vadd.f32 %v986, %v1001
          %v1010 = vadd.f32 %v987, %v1001
          %v1011 = vadd.f32 %v988, %v1001
          %v1012 = vadd.f32 %v989, %v1001
          %v1013 = vadd.f32 %v990, %v1001
          %v1014 = vadd.f32 %v991, %v1001
          %v1015 = vadd.f32 %v992, %v1001
          %v1016 = vadd.f32 %v993, %v1001
          %v1017 = vadd.f32 %v994, %v1001
          %v1018 = vadd.f32 %v995, %v1001
          %p1019 = scmp.lt.s32.totalorder %s23, 2
          // Predicated region
          $region69: #{tpu_custom_call.1} parent=67 // pred_check
            %p1020 = pneg %p1019
          $region70: #{tpu_custom_call.1} parent=67 // pred_check_branch
            %1022 = sbr.rel (%p1020) target = $region72
          $region71: #{tpu_custom_call.1} parent=67 // pred_region
            %v1023 = vmax.f32 %v1003, 0.0
            %v1024 = vmax.f32 %v1004, 0.0
            %v1025 = vmax.f32 %v1005, 0.0
            %v1026 = vmax.f32 %v1006, 0.0
            %v1027 = vmax.f32 %v1007, 0.0
            %v1028 = vmax.f32 %v1008, 0.0
            %v1029 = vmax.f32 %v1009, 0.0
            %v1030 = vmax.f32 %v1010, 0.0
            %v1031 = vmax.f32 %v1011, 0.0
            %v1032 = vmax.f32 %v1012, 0.0
            %v1033 = vmax.f32 %v1013, 0.0
            %v1034 = vmax.f32 %v1014, 0.0
            %v1035 = vmax.f32 %v1015, 0.0
            %v1036 = vmax.f32 %v1016, 0.0
            %v1037 = vmax.f32 %v1017, 0.0
            %v1038 = vmax.f32 %v1018, 0.0
            %s1039 = smul.u32 %s24, 128
            %v1040 = vpack.c.bf16 %v1024, %v1023
            %v1041 = vpack.c.bf16 %v1026, %v1025
            %v1042 = vpack.c.bf16 %v1028, %v1027
            %v1043 = vpack.c.bf16 %v1030, %v1029
            %v1044 = vpack.c.bf16 %v1032, %v1031
            %v1045 = vpack.c.bf16 %v1034, %v1033
            %v1046 = vpack.c.bf16 %v1036, %v1035
            %v1047 = vpack.c.bf16 %v1038, %v1037
            %s1048 = sshra.s32 %s1039, 4
            %s1049 = sand.u32 %s1039, 15
            %s1050 = smul.addr %s1048, 8
            %s1051 = scalar_lea.vmem [#allocation2], %s1050
            %1052 = vst [vmem:[%s1051] sm:$0xff] %v1040
            %1053 = vst [vmem:[%s1051 + $0x8] sm:$0xff] %v1041
            %1054 = vst [vmem:[%s1051 + $0x10] sm:$0xff] %v1042
            %1055 = vst [vmem:[%s1051 + $0x18] sm:$0xff] %v1043
            %1056 = vst [vmem:[%s1051 + $0x20] sm:$0xff] %v1044
            %1057 = vst [vmem:[%s1051 + $0x28] sm:$0xff] %v1045
            %1058 = vst [vmem:[%s1051 + $0x30] sm:$0xff] %v1046
            %1059 = vst [vmem:[%s1051 + $0x38] sm:$0xff] %v1047
            %1060 = vst [vmem:[#allocation11] sm:$0xff] %v1023
            %1061 = vst [vmem:[#allocation11 + $0x8] sm:$0xff] %v1024
            %1062 = vst [vmem:[#allocation11 + $0x10] sm:$0xff] %v1025
            %1063 = vst [vmem:[#allocation11 + $0x18] sm:$0xff] %v1026
            %1064 = vst [vmem:[#allocation11 + $0x20] sm:$0xff] %v1027
            %1065 = vst [vmem:[#allocation11 + $0x28] sm:$0xff] %v1028
            %1066 = vst [vmem:[#allocation11 + $0x30] sm:$0xff] %v1029
            %1067 = vst [vmem:[#allocation11 + $0x38] sm:$0xff] %v1030
            %1068 = vst [vmem:[#allocation11 + $0x40] sm:$0xff] %v1031
            %1069 = vst [vmem:[#allocation11 + $0x48] sm:$0xff] %v1032
            %1070 = vst [vmem:[#allocation11 + $0x50] sm:$0xff] %v1033
            %1071 = vst [vmem:[#allocation11 + $0x58] sm:$0xff] %v1034
            %1072 = vst [vmem:[#allocation11 + $0x60] sm:$0xff] %v1035
            %1073 = vst [vmem:[#allocation11 + $0x68] sm:$0xff] %v1036
            %1074 = vst [vmem:[#allocation11 + $0x70] sm:$0xff] %v1037
            %1075 = vst [vmem:[#allocation11 + $0x78] sm:$0xff] %v1038
          $region72: #{tpu_custom_call.1} parent=67 // pred_fallthru
            _
          %p1076 = scmp.eq.s32.totalorder %s23, 2
          // Predicated region
          $region73: #{tpu_custom_call.1} parent=67 // pred_check
            %p1077 = pneg %p1076
          $region74: #{tpu_custom_call.1} parent=67 // pred_check_branch
            %1079 = sbr.rel (%p1077) target = $region76
          $region75: #{tpu_custom_call.1} parent=67 // pred_region
            %1080 = vmax.xlane.f32.xlu0 %v1003
            %v1081 = vpop.xlane.xlu0 %1080
            %1082 = vmax.xlane.f32.xlu0 %v1004
            %v1083 = vpop.xlane.xlu0 %1082
            %1084 = vmax.xlane.f32.xlu0 %v1005
            %v1085 = vpop.xlane.xlu0 %1084
            %1086 = vmax.xlane.f32.xlu0 %v1006
            %v1087 = vpop.xlane.xlu0 %1086
            %1088 = vmax.xlane.f32.xlu0 %v1007
            %v1089 = vpop.xlane.xlu0 %1088
            %1090 = vmax.xlane.f32.xlu0 %v1008
            %v1091 = vpop.xlane.xlu0 %1090
            %1092 = vmax.xlane.f32.xlu0 %v1009
            %v1093 = vpop.xlane.xlu0 %1092
            %1094 = vmax.xlane.f32.xlu0 %v1010
            %v1095 = vpop.xlane.xlu0 %1094
            %1096 = vmax.xlane.f32.xlu0 %v1011
            %v1097 = vpop.xlane.xlu0 %1096
            %1098 = vmax.xlane.f32.xlu0 %v1012
            %v1099 = vpop.xlane.xlu0 %1098
            %1100 = vmax.xlane.f32.xlu0 %v1013
            %v1101 = vpop.xlane.xlu0 %1100
            %1102 = vmax.xlane.f32.xlu0 %v1014
            %v1103 = vpop.xlane.xlu0 %1102
            %1104 = vmax.xlane.f32.xlu0 %v1015
            %v1105 = vpop.xlane.xlu0 %1104
            %1106 = vmax.xlane.f32.xlu0 %v1016
            %v1107 = vpop.xlane.xlu0 %1106
            %1108 = vmax.xlane.f32.xlu0 %v1017
            %v1109 = vpop.xlane.xlu0 %1108
            %1110 = vmax.xlane.f32.xlu0 %v1018
            %v1111 = vpop.xlane.xlu0 %1110
            %v1112 = vsub.f32 %v1003, %v1081
            %v1113 = vsub.f32 %v1004, %v1083
            %v1114 = vsub.f32 %v1005, %v1085
            %v1115 = vsub.f32 %v1006, %v1087
            %v1116 = vsub.f32 %v1007, %v1089
            %v1117 = vsub.f32 %v1008, %v1091
            %v1118 = vsub.f32 %v1009, %v1093
            %v1119 = vsub.f32 %v1010, %v1095
            %v1120 = vsub.f32 %v1011, %v1097
            %v1121 = vsub.f32 %v1012, %v1099
            %v1122 = vsub.f32 %v1013, %v1101
            %v1123 = vsub.f32 %v1014, %v1103
            %v1124 = vsub.f32 %v1015, %v1105
            %v1125 = vsub.f32 %v1016, %v1107
            %v1126 = vsub.f32 %v1017, %v1109
            %v1127 = vsub.f32 %v1018, %v1111
            %v1128 = vmul.f32 %v1112, 1.442695
            %v1129 = vpow.pop %v1128
            %v1130 = vmul.f32 %v1113, 1.442695
            %v1131 = vpow.pop %v1130
            %v1132 = vmul.f32 %v1114, 1.442695
            %v1133 = vpow.pop %v1132
            %v1134 = vmul.f32 %v1115, 1.442695
            %v1135 = vpow.pop %v1134
            %v1136 = vmul.f32 %v1116, 1.442695
            %v1137 = vpow.pop %v1136
            %v1138 = vmul.f32 %v1117, 1.442695
            %v1139 = vpow.pop %v1138
            %v1140 = vmul.f32 %v1118, 1.442695
            %v1141 = vpow.pop %v1140
            %v1142 = vmul.f32 %v1119, 1.442695
            %v1143 = vpow.pop %v1142
            %v1144 = vmul.f32 %v1120, 1.442695
            %v1145 = vpow.pop %v1144
            %v1146 = vmul.f32 %v1121, 1.442695
            %v1147 = vpow.pop %v1146
            %v1148 = vmul.f32 %v1122, 1.442695
            %v1149 = vpow.pop %v1148
            %v1150 = vmul.f32 %v1123, 1.442695
            %v1151 = vpow.pop %v1150
            %v1152 = vmul.f32 %v1124, 1.442695
            %v1153 = vpow.pop %v1152
            %v1154 = vmul.f32 %v1125, 1.442695
            %v1155 = vpow.pop %v1154
            %v1156 = vmul.f32 %v1126, 1.442695
            %v1157 = vpow.pop %v1156
            %v1158 = vmul.f32 %v1127, 1.442695
            %v1159 = vpow.pop %v1158
            %1160 = vadd.xlane.f32.xlu0 %v1129
            %v1161 = vpop.xlane.xlu0 %1160
            %1162 = vadd.xlane.f32.xlu0 %v1131
            %v1163 = vpop.xlane.xlu0 %1162
            %1164 = vadd.xlane.f32.xlu0 %v1133
            %v1165 = vpop.xlane.xlu0 %1164
            %1166 = vadd.xlane.f32.xlu0 %v1135
            %v1167 = vpop.xlane.xlu0 %1166
            %1168 = vadd.xlane.f32.xlu0 %v1137
            %v1169 = vpop.xlane.xlu0 %1168
            %1170 = vadd.xlane.f32.xlu0 %v1139
            %v1171 = vpop.xlane.xlu0 %1170
            %1172 = vadd.xlane.f32.xlu0 %v1141
            %v1173 = vpop.xlane.xlu0 %1172
            %1174 = vadd.xlane.f32.xlu0 %v1143
            %v1175 = vpop.xlane.xlu0 %1174
            %1176 = vadd.xlane.f32.xlu0 %v1145
            %v1177 = vpop.xlane.xlu0 %1176
            %1178 = vadd.xlane.f32.xlu0 %v1147
            %v1179 = vpop.xlane.xlu0 %1178
            %1180 = vadd.xlane.f32.xlu0 %v1149
            %v1181 = vpop.xlane.xlu0 %1180
            %1182 = vadd.xlane.f32.xlu0 %v1151
            %v1183 = vpop.xlane.xlu0 %1182
            %1184 = vadd.xlane.f32.xlu0 %v1153
            %v1185 = vpop.xlane.xlu0 %1184
            %1186 = vadd.xlane.f32.xlu0 %v1155
            %v1187 = vpop.xlane.xlu0 %1186
            %1188 = vadd.xlane.f32.xlu0 %v1157
            %v1189 = vpop.xlane.xlu0 %1188
            %1190 = vadd.xlane.f32.xlu0 %v1159
            %v1191 = vpop.xlane.xlu0 %1190
            %v1192 = vlog2.pop %v1161
            %v1193 = vmul.f32 %v1192, 0.6931472
            %v1194 = vlog2.pop %v1163
            %v1195 = vmul.f32 %v1194, 0.6931472
            %v1196 = vlog2.pop %v1165
            %v1197 = vmul.f32 %v1196, 0.6931472
            %v1198 = vlog2.pop %v1167
            %v1199 = vmul.f32 %v1198, 0.6931472
            %v1200 = vlog2.pop %v1169
            %v1201 = vmul.f32 %v1200, 0.6931472
            %v1202 = vlog2.pop %v1171
            %v1203 = vmul.f32 %v1202, 0.6931472
            %v1204 = vlog2.pop %v1173
            %v1205 = vmul.f32 %v1204, 0.6931472
            %v1206 = vlog2.pop %v1175
            %v1207 = vmul.f32 %v1206, 0.6931472
            %v1208 = vlog2.pop %v1177
            %v1209 = vmul.f32 %v1208, 0.6931472
            %v1210 = vlog2.pop %v1179
            %v1211 = vmul.f32 %v1210, 0.6931472
            %v1212 = vlog2.pop %v1181
            %v1213 = vmul.f32 %v1212, 0.6931472
            %v1214 = vlog2.pop %v1183
            %v1215 = vmul.f32 %v1214, 0.6931472
            %v1216 = vlog2.pop %v1185
            %v1217 = vmul.f32 %v1216, 0.6931472
            %v1218 = vlog2.pop %v1187
            %v1219 = vmul.f32 %v1218, 0.6931472
            %v1220 = vlog2.pop %v1189
            %v1221 = vmul.f32 %v1220, 0.6931472
            %v1222 = vlog2.pop %v1191
            %v1223 = vmul.f32 %v1222, 0.6931472
            %v1224 = vsub.f32 %v1112, %v1193
            %v1225 = vsub.f32 %v1113, %v1195
            %v1226 = vsub.f32 %v1114, %v1197
            %v1227 = vsub.f32 %v1115, %v1199
            %v1228 = vsub.f32 %v1116, %v1201
            %v1229 = vsub.f32 %v1117, %v1203
            %v1230 = vsub.f32 %v1118, %v1205
            %v1231 = vsub.f32 %v1119, %v1207
            %v1232 = vsub.f32 %v1120, %v1209
            %v1233 = vsub.f32 %v1121, %v1211
            %v1234 = vsub.f32 %v1122, %v1213
            %v1235 = vsub.f32 %v1123, %v1215
            %v1236 = vsub.f32 %v1124, %v1217
            %v1237 = vsub.f32 %v1125, %v1219
            %v1238 = vsub.f32 %v1126, %v1221
            %v1239 = vsub.f32 %v1127, %v1223
            %1240 = vst [vmem:[#allocation11] sm:$0xff] %v1224
            %1241 = vst [vmem:[#allocation11 + $0x8] sm:$0xff] %v1225
            %1242 = vst [vmem:[#allocation11 + $0x10] sm:$0xff] %v1226
            %1243 = vst [vmem:[#allocation11 + $0x18] sm:$0xff] %v1227
            %1244 = vst [vmem:[#allocation11 + $0x20] sm:$0xff] %v1228
            %1245 = vst [vmem:[#allocation11 + $0x28] sm:$0xff] %v1229
            %1246 = vst [vmem:[#allocation11 + $0x30] sm:$0xff] %v1230
            %1247 = vst [vmem:[#allocation11 + $0x38] sm:$0xff] %v1231
            %1248 = vst [vmem:[#allocation11 + $0x40] sm:$0xff] %v1232
            %1249 = vst [vmem:[#allocation11 + $0x48] sm:$0xff] %v1233
            %1250 = vst [vmem:[#allocation11 + $0x50] sm:$0xff] %v1234
            %1251 = vst [vmem:[#allocation11 + $0x58] sm:$0xff] %v1235
            %1252 = vst [vmem:[#allocation11 + $0x60] sm:$0xff] %v1236
            %1253 = vst [vmem:[#allocation11 + $0x68] sm:$0xff] %v1237
            %1254 = vst [vmem:[#allocation11 + $0x70] sm:$0xff] %v1238
            %1255 = vst [vmem:[#allocation11 + $0x78] sm:$0xff] %v1239
          $region76: #{tpu_custom_call.1} parent=67 // pred_fallthru
            _
        $region68: #{tpu_custom_call.1} parent=35 // pred_fallthru
          _
        // Predicated region
        $region77: #{tpu_custom_call.1} parent=35 // pred_check
          %p1256 = pneg %p156
        $region78: #{tpu_custom_call.1} parent=35 // pred_check_branch
          %1258 = sbr.rel (%p1256) target = $region80
        $region79: #{tpu_custom_call.1} parent=35 // pred_region
          %s1259 = smul.u32 16, %s24
          %s1261 = ssub.s32 2048, 2048
          %1262 = vsyncadd [#allocation7], %s1261
          %s1263 = smul.addr %s1259, 128
          %s1264 = scalar_lea.hbm %s4, %s1263
          %s1265 = sshll.u32 [#allocation11], 4
          %s1266 = int_to_ptr.vmem [resolvable:$true] %s1265
          %1271 = dma.vmem_to_hbm [thread:$0]  %s1266, 2048, %s1264, [#allocation7], 128, 128, 8
        $region80: #{tpu_custom_call.1} parent=35 // pred_fallthru
          _
        // Predicated region
        $region81: #{tpu_custom_call.1} parent=35 // pred_check
          %p1272 = pneg %p156
        $region82: #{tpu_custom_call.1} parent=35 // pred_check_branch
          %1274 = sbr.rel (%p1272) target = $region84
        $region83: #{tpu_custom_call.1} parent=35 // pred_region
          %1275 = dma.done [#allocation7], 2048
        $region84: #{tpu_custom_call.1} parent=35 // pred_fallthru
          _
      $region36: #{tpu_custom_call.1} parent=5 // pred_fallthru
        _
      %p1276 = scmp.le.s32.totalorder 2, %s13
      // Predicated region
      $region85: #{tpu_custom_call.1} parent=5 // pred_check
        %p1277 = pneg %p1276
      $region86: #{tpu_custom_call.1} parent=5 // pred_check_branch
        %1279 = sbr.rel (%p1277) target = $region88
      $region87: #{tpu_custom_call.1} parent=5 // pred_region
        %s1280 = ssub.s32 %s13, 2
      $region88: #{tpu_custom_call.1} parent=5 // pred_fallthru
        _
    $region6: #{tpu_custom_call.1} parent=1 // loop_footer
      %s17 = sadd.s32 1, %s13
    $region7: #{tpu_custom_call.1} parent=1 // loop_footer_branch
      %12 = sbr.rel target = $region3
    $region8: #{tpu_custom_call.1} parent=1 // loop_exit
      _
    %1281 = vsyncpa [#allocation6], 1
    %s1282 = scalar_lea.sflag [#allocation6], 1
    %1283 = vsyncpa %s1282, 1
    %1284 = vsyncpa [#allocation9], 1
    %1285 = vsyncpa [#allocation7], 1
    %s1286 = scalar_lea.sflag [#allocation7], 1
    %1287 = vsyncpa %s1286, 1

</llo_original>
